<compile_context>
chip_gen: v5e
topology: v5e:2x2
jax: 0.10.0
libtpu: 0.0.40
codegen_flags: <defaults>
</compile_context>

<pallas_src>
import functools
import random

import jax
import jax.numpy as jnp
from jax.experimental import pallas as pl
from jax.experimental.pallas import tpu as pltpu

BN_EPS = 1e-5
_LANE = 128                         # pad Cout to this (lane-dense stores)
_VMEM_LIMIT = 48 * 1024 * 1024      # fits v7x 64 MiB/TC; fine on v5e/v6e


# ------------------------------- helpers ----------------------------------- #

def _round_up(x, m):
    return (x + m - 1) // m * m


def _mosaic_params():
    return pltpu.CompilerParams(dimension_semantics=("parallel",),
                                vmem_limit_bytes=_VMEM_LIMIT)


def _taps(stride):
    # 3x3 taps as (phase index, row offset, col offset) into the phase stack,
    # ordered kh*3+kw to match w.reshape(9, cin, cout).
    return [((kh % stride) * stride + (kw % stride), kh // stride, kw // stride)
            for kh in range(3) for kw in range(3)]


def _phase_stack(xp, stride):
    # (N, Hp, Wp, C) -> (N, s*s, ceil(Hp/s), ceil(Wp/s), C): a strided 3x3 conv
    # becomes 9 CONTIGUOUS shifted-window matmuls inside the kernel.
    n, hp, wp, c = xp.shape
    if stride == 1:
        return xp[:, None]
    hq = -(-hp // stride)
    wq = -(-wp // stride)
    xp = jnp.pad(xp, ((0, 0), (0, hq * stride - hp), (0, wq * stride - wp), (0, 0)))
    xp = xp.reshape(n, hq, stride, wq, stride, c)
    return jnp.transpose(xp, (0, 2, 4, 1, 3, 5)).reshape(n, stride * stride, hq, wq, c)


def _vec_spec(cpad):
    return pl.BlockSpec((1, 1, cpad), lambda i: (0, 0, 0))


# ----------------------------- Pallas kernels ------------------------------ #

def _conv3x3_stats_kernel(x_ref, w_ref, y_ref, s_ref, q_ref, *, taps, ho, wo):
    # In-kernel 3x3 conv: 9 shifted-window matmuls (bf16 in, f32 acc) plus
    # per-image BN partials (sum and mean-centred sum of squares).
    m2d = ho * wo
    cin = x_ref.shape[-1]
    cpad = w_ref.shape[-1]
    acc = jnp.zeros((m2d, cpad), jnp.float32)
    for t, (p, ro, co) in enumerate(taps):
        win = x_ref[0, p, ro:ro + ho, co:co + wo, :]            # (ho, wo, cin) bf16
        lhs = win.astype(jnp.float32).reshape(m2d, cin).astype(jnp.bfloat16)
        acc = acc + jnp.dot(lhs, w_ref[t], preferred_element_type=jnp.float32)
    s = jnp.sum(acc, axis=0, keepdims=True)
    d = acc - s * (1.0 / m2d)
    s_ref[0] = s
    q_ref[0] = jnp.sum(d * d, axis=0, keepdims=True)
    y_ref[0] = acc.astype(y_ref.dtype)


def _conv2_stats_kernel(*refs, ho, wo, with_shortcut):
    # conv2 (3x3, stride 1) with the BN1 affine + ReLU fused into the load
    # path; the spatial zero border of conv2's input is enforced with a tiny
    # mask input.  Emits conv2's BN partials and (optionally) the 1x1 shortcut
    # conv's partials -- its cheap matmul is recomputed in the finalize kernel.
    if with_shortcut:
        (y1p_ref, mask_ref, sc1_ref, sh1_ref, w2_ref, xs_ref, ws_ref,
         y2_ref, s2_ref, q2_ref, ss_ref, qs_ref) = refs
    else:
        (y1p_ref, mask_ref, sc1_ref, sh1_ref, w2_ref,
         y2_ref, s2_ref, q2_ref) = refs
    m2d = ho * wo
    cpad = w2_ref.shape[-1]
    sc1 = sc1_ref[...]                                          # (1, 1, cpad) f32
    sh1 = sh1_ref[...]
    acc = jnp.zeros((m2d, cpad), jnp.float32)
    for kh in range(3):
        for kw in range(3):
            win = y1p_ref[0, kh:kh + ho, kw:kw + wo, :].astype(jnp.float32)
            mwin = mask_ref[0, kh:kh + ho, kw:kw + wo, :]       # (ho, wo, 1)
            a = jnp.maximum(win * sc1 + sh1, 0.0) * mwin        # BN1 + ReLU + border
            lhs = a.reshape(m2d, cpad).astype(jnp.bfloat16)
            acc = acc + jnp.dot(lhs, w2_ref[kh * 3 + kw],
                                preferred_element_type=jnp.float32)
    s2 = jnp.sum(acc, axis=0, keepdims=True)
    d2 = acc - s2 * (1.0 / m2d)
    s2_ref[0] = s2
    q2_ref[0] = jnp.sum(d2 * d2, axis=0, keepdims=True)
    y2_ref[0] = acc.astype(y2_ref.dtype)
    if with_shortcut:
        accs = jnp.dot(xs_ref[0], ws_ref[...], preferred_element_type=jnp.float32)
        ss = jnp.sum(accs, axis=0, keepdims=True)
        ds = accs - ss * (1.0 / m2d)
        ss_ref[0] = ss
        qs_ref[0] = jnp.sum(ds * ds, axis=0, keepdims=True)


def _finalize_sc_kernel(y2_ref, xs_ref, ws_ref, sc2_ref, sh2_ref,
                        scs_ref, shs_ref, o_ref):
    # BN2(conv2) + BN_s(1x1 shortcut, recomputed) + add + ReLU.
    main = y2_ref[0].astype(jnp.float32) * sc2_ref[0] + sh2_ref[0]
    accs = jnp.dot(xs_ref[0], ws_ref[...], preferred_element_type=jnp.float32)
    o_ref[0] = jnp.maximum(main + accs * scs_ref[0] + shs_ref[0], 0.0)


def _finalize_id_kernel(y2_ref, res_ref, sc2_ref, sh2_ref, o_ref):
    # BN2(conv2) + identity residual (f32, zero-padded lanes) + ReLU.
    main = y2_ref[0].astype(jnp.float32) * sc2_ref[0] + sh2_ref[0]
    o_ref[0] = jnp.maximum(main + res_ref[0], 0.0)


def _mm_stats_kernel(x_ref, w_ref, s_ref, q_ref):
    # 1x1 conv (stats only) for the standalone shortcut branch.
    acc = jnp.dot(x_ref[0], w_ref[...], preferred_element_type=jnp.float32)
    s = jnp.sum(acc, axis=0, keepdims=True)
    d = acc - s * (1.0 / acc.shape[0])
    s_ref[0] = s
    q_ref[0] = jnp.sum(d * d, axis=0, keepdims=True)


def _mm_affine_kernel(x_ref, w_ref, sc_ref, sh_ref, o_ref):
    # 1x1 conv recomputed + global-stat BN affine.
    acc = jnp.dot(x_ref[0], w_ref[...], preferred_element_type=jnp.float32)
    o_ref[0] = acc * sc_ref[0] + sh_ref[0]


# --------------------------- pallas_call wrappers --------------------------- #

def _conv3x3_stats(xph, w_taps, taps, ho, wo):
    n, nph, hq, wq, cin = xph.shape
    cpad = w_taps.shape[-1]
    m2d = ho * wo
    stat_spec = pl.BlockSpec((1, 1, cpad), lambda i: (i, 0, 0))
    stat_shape = jax.ShapeDtypeStruct((n, 1, cpad), jnp.float32)
    return pl.pallas_call(
        functools.partial(_conv3x3_stats_kernel, taps=taps, ho=ho, wo=wo),
        grid=(n,),
        in_specs=[pl.BlockSpec((1, nph, hq, wq, cin), lambda i: (i, 0, 0, 0, 0)),
                  pl.BlockSpec(w_taps.shape, lambda i: (0, 0, 0))],
        out_specs=(pl.BlockSpec((1, m2d, cpad), lambda i: (i, 0, 0)),
                   stat_spec, stat_spec),
        out_shape=(jax.ShapeDtypeStruct((n, m2d, cpad), jnp.bfloat16),
                   stat_shape, stat_shape),
        compiler_params=_mosaic_params(),
    )(xph, w_taps)


def _conv2_stats(y1p, mask, sc1, sh1, w2_taps, xs, ws, ho, wo, with_shortcut):
    n, hop, wop, cpad = y1p.shape
    m2d = ho * wo
    stat_spec = pl.BlockSpec((1, 1, cpad), lambda i: (i, 0, 0))
    stat_shape = jax.ShapeDtypeStruct((n, 1, cpad), jnp.float32)
    in_specs = [pl.BlockSpec((1, hop, wop, cpad), lambda i: (i, 0, 0, 0)),
                pl.BlockSpec((1, hop, wop, 1), lambda i: (0, 0, 0, 0)),
                _vec_spec(cpad), _vec_spec(cpad),
                pl.BlockSpec(w2_taps.shape, lambda i: (0, 0, 0))]
    out_specs = [pl.BlockSpec((1, m2d, cpad), lambda i: (i, 0, 0)),
                 stat_spec, stat_spec]
    out_shape = [jax.ShapeDtypeStruct((n, m2d, cpad), jnp.bfloat16),
                 stat_shape, stat_shape]
    args = [y1p, mask, sc1, sh1, w2_taps]
    if with_shortcut:
        cin = xs.shape[-1]
        in_specs += [pl.BlockSpec((1, m2d, cin), lambda i: (i, 0, 0)),
                     pl.BlockSpec(ws.shape, lambda i: (0, 0))]
        out_specs += [stat_spec, stat_spec]
        out_shape += [stat_shape, stat_shape]
        args += [xs, ws]
    return pl.pallas_call(
        functools.partial(_conv2_stats_kernel, ho=ho, wo=wo,
                          with_shortcut=with_shortcut),
        grid=(n,),
        in_specs=in_specs,
        out_specs=tuple(out_specs),
        out_shape=tuple(out_shape),
        compiler_params=_mosaic_params(),
    )(*args)


def _finalize_sc(y2, xs, ws, sc2, sh2, scs, shs):
    n, m2d, cpad = y2.shape
    cin = xs.shape[-1]
    return pl.pallas_call(
        _finalize_sc_kernel,
        grid=(n,),
        in_specs=[pl.BlockSpec((1, m2d, cpad), lambda i: (i, 0, 0)),
                  pl.BlockSpec((1, m2d, cin), lambda i: (i, 0, 0)),
                  pl.BlockSpec(ws.shape, lambda i: (0, 0)),
                  _vec_spec(cpad), _vec_spec(cpad), _vec_spec(cpad), _vec_spec(cpad)],
        out_specs=pl.BlockSpec((1, m2d, cpad), lambda i: (i, 0, 0)),
        out_shape=jax.ShapeDtypeStruct((n, m2d, cpad), jnp.float32),
        compiler_params=_mosaic_params(),
    )(y2, xs, ws, sc2, sh2, scs, shs)


def _finalize_id(y2, res, sc2, sh2):
    n, m2d, cpad = y2.shape
    return pl.pallas_call(
        _finalize_id_kernel,
        grid=(n,),
        in_specs=[pl.BlockSpec((1, m2d, cpad), lambda i: (i, 0, 0)),
                  pl.BlockSpec((1, m2d, cpad), lambda i: (i, 0, 0)),
                  _vec_spec(cpad), _vec_spec(cpad)],
        out_specs=pl.BlockSpec((1, m2d, cpad), lambda i: (i, 0, 0)),
        out_shape=jax.ShapeDtypeStruct((n, m2d, cpad), jnp.float32),
        compiler_params=_mosaic_params(),
    )(y2, res, sc2, sh2)


def _mm_stats(xs, ws):
    n, m2d, cin = xs.shape
    cpad = ws.shape[-1]
    stat_spec = pl.BlockSpec((1, 1, cpad), lambda i: (i, 0, 0))
    stat_shape = jax.ShapeDtypeStruct((n, 1, cpad), jnp.float32)
    return pl.pallas_call(
        _mm_stats_kernel,
        grid=(n,),
        in_specs=[pl.BlockSpec((1, m2d, cin), lambda i: (i, 0, 0)),
                  pl.BlockSpec(ws.shape, lambda i: (0, 0))],
        out_specs=(stat_spec, stat_spec),
        out_shape=(stat_shape, stat_shape),
        compiler_params=_mosaic_params(),
    )(xs, ws)


def _mm_affine(xs, ws, sc, sh):
    n, m2d, cin = xs.shape
    cpad = ws.shape[-1]
    return pl.pallas_call(
        _mm_affine_kernel,
        grid=(n,),
        in_specs=[pl.BlockSpec((1, m2d, cin), lambda i: (i, 0, 0)),
                  pl.BlockSpec(ws.shape, lambda i: (0, 0)),
                  _vec_spec(cpad), _vec_spec(cpad)],
        out_specs=pl.BlockSpec((1, m2d, cpad), lambda i: (i, 0, 0)),
        out_shape=jax.ShapeDtypeStruct((n, m2d, cpad), jnp.float32),
        compiler_params=_mosaic_params(),
    )(xs, ws, sc, sh)


def _bn_affine(sums, m2s, rows_per_tile, gamma_p, beta_p):
    # Chan-style combine of per-image (sum, centred-M2) partials into the
    # global BN scale/shift.  Tiny JAX reduction (N x C elements).
    n_tiles = sums.shape[0]
    total = n_tiles * rows_per_tile
    s = jnp.sum(sums[:, 0, :], axis=0)
    mean = s / total
    tile_mean = sums[:, 0, :] / rows_per_tile
    m2 = jnp.sum(m2s[:, 0, :], axis=0) + rows_per_tile * jnp.sum(
        (tile_mean - mean[None, :]) ** 2, axis=0)
    var = jnp.maximum(m2 / total, 0.0)
    scale = gamma_p * jax.lax.rsqrt(var + BN_EPS)
    shift = beta_p - mean * scale
    return scale.reshape(1, 1, -1), shift.reshape(1, 1, -1)


# -------------------------------- the block -------------------------------- #

class BasicBlockPallas:
    """Pallas/JAX port of BasicBlock.  Works on NHWC tensors."""
    expansion = 1

    def __init__(self, in_planes, planes, stride=1, passing_prob=0.0,
                 recycling_prob=0.0, index=0, key=None):
        self.index = index
        self.in_planes = in_planes
        self.planes = planes
        self.stride = stride
        self.passing_prob = passing_prob
        self.recycling_prob = recycling_prob
        self.c_pad = _round_up(planes, _LANE)     # lane-dense Cout
        self.cin_p = _round_up(in_planes, 16)     # bf16-friendly matmul K

        key = jax.random.PRNGKey(0) if key is None else key
        k1, k2, k3, k4, k5 = jax.random.split(key, 5)
        # Deterministic synthetic parameters (HWIO conv weights, BN affine).
        self.w1 = 0.1 * jax.random.normal(k1, (3, 3, in_planes, planes), jnp.float32)
        self.w2 = 0.1 * jax.random.normal(k2, (3, 3, planes, planes), jnp.float32)
        self.gamma1 = 1.0 + 0.1 * jax.random.normal(k4, (planes,), jnp.float32)
        self.beta1 = 0.1 * jax.random.normal(k5, (planes,), jnp.float32)
        self.gamma2 = jnp.ones((planes,), jnp.float32)
        self.beta2 = jnp.zeros((planes,), jnp.float32)

        cpad, cin_p = self.c_pad, self.cin_p
        # Tap-major bf16 weights, zero-padded to lane-dense shapes.
        self.w1_t = (jnp.zeros((9, cin_p, cpad), jnp.float32)
                     .at[:, :in_planes, :planes]
                     .set(self.w1.reshape(9, in_planes, planes))
                     .astype(jnp.bfloat16))
        self.w2_t = (jnp.zeros((9, cpad, cpad), jnp.float32)
                     .at[:, :planes, :planes]
                     .set(self.w2.reshape(9, planes, planes))
                     .astype(jnp.bfloat16))
        # BN params padded with ZEROS so padded lanes stay exactly zero.
        self.gamma1_p = jnp.zeros((cpad,), jnp.float32).at[:planes].set(self.gamma1)
        self.beta1_p = jnp.zeros((cpad,), jnp.float32).at[:planes].set(self.beta1)
        self.gamma2_p = jnp.zeros((cpad,), jnp.float32).at[:planes].set(self.gamma2)
        self.beta2_p = jnp.zeros((cpad,), jnp.float32).at[:planes].set(self.beta2)

        self.has_shortcut_conv = (stride != 1) or (in_planes != self.expansion * planes)
        if self.has_shortcut_conv:
            self.ws = 0.1 * jax.random.normal(k3, (1, 1, in_planes, planes), jnp.float32)
            self.gamma_s = jnp.ones((planes,), jnp.float32)
            self.beta_s = jnp.zeros((planes,), jnp.float32)
            self.ws_p = (jnp.zeros((cin_p, cpad), jnp.float32)
                         .at[:in_planes, :planes]
                         .set(self.ws.reshape(in_planes, planes))
                         .astype(jnp.bfloat16))
            self.gamma_s_p = jnp.zeros((cpad,), jnp.float32).at[:planes].set(self.gamma_s)
            self.beta_s_p = jnp.zeros((cpad,), jnp.float32).at[:planes].set(self.beta_s)

    # -- sub-graphs -- #
    def _strided_input(self, x_nhwc):
        # bf16, channel-padded, row-flattened input for the 1x1 shortcut conv.
        n = x_nhwc.shape[0]
        xs = x_nhwc[:, ::self.stride, ::self.stride, :].astype(jnp.bfloat16)
        _, ho, wo, cin = xs.shape
        xs = jnp.pad(xs, ((0, 0), (0, 0), (0, 0), (0, self.cin_p - cin)))
        return xs.reshape(n, ho * wo, self.cin_p), ho, wo

    def _shortcut(self, x_nhwc):
        if not self.has_shortcut_conv:
            return x_nhwc
        xs, ho, wo = self._strided_input(x_nhwc)
        n, m2d, _ = xs.shape
        ss, qs = _mm_stats(xs, self.ws_p)
        scs, shs = _bn_affine(ss, qs, m2d, self.gamma_s_p, self.beta_s_p)
        out = _mm_affine(xs, self.ws_p, scs, shs)
        return out[:, :, :self.planes].reshape(n, ho, wo, self.planes)

    def _main_path(self, x_nhwc):
        n, h, w, cin = x_nhwc.shape
        s = self.stride
        planes, cpad, cin_p = self.planes, self.c_pad, self.cin_p
        ho = (h - 1) // s + 1
        wo = (w - 1) // s + 1
        m2d = ho * wo

        # ---- conv1 (3x3, stride s): in-kernel shifted-window matmuls ----
        # Cast to bf16 BEFORE any materialization; phase-stack makes the
        # strided conv contiguous inside the kernel.
        xb = jnp.pad(x_nhwc.astype(jnp.bfloat16),
                     ((0, 0), (1, 1), (1, 1), (0, cin_p - cin)))
        xph = _phase_stack(xb, s)
        y1, s1, q1 = _conv3x3_stats(xph, self.w1_t, _taps(s), ho, wo)
        sc1, sh1 = _bn_affine(s1, q1, m2d, self.gamma1_p, self.beta1_p)

        # Raw conv1 output, spatially padded once (bf16).  BN1 affine + ReLU +
        # border zeroing are fused into the conv2 kernel's load path below.
        y1p = jnp.pad(y1.reshape(n, ho, wo, cpad),
                      ((0, 0), (1, 1), (1, 1), (0, 0)))
        mask = jnp.pad(jnp.ones((1, ho, wo, 1), jnp.float32),
                       ((0, 0), (1, 1), (1, 1), (0, 0)))

        if self.has_shortcut_conv:
            xs, _, _ = self._strided_input(x_nhwc)
            y2, s2, q2, ss, qs = _conv2_stats(
                y1p, mask, sc1, sh1, self.w2_t, xs, self.ws_p, ho, wo, True)
            sc2, sh2 = _bn_affine(s2, q2, m2d, self.gamma2_p, self.beta2_p)
            scs, shs = _bn_affine(ss, qs, m2d, self.gamma_s_p, self.beta_s_p)
            out = _finalize_sc(y2, xs, self.ws_p, sc2, sh2, scs, shs)
        else:
            y2, s2, q2 = _conv2_stats(
                y1p, mask, sc1, sh1, self.w2_t, None, None, ho, wo, False)
            sc2, sh2 = _bn_affine(s2, q2, m2d, self.gamma2_p, self.beta2_p)
            # Identity residual stays f32; channels zero-padded to the lane width.
            res = jnp.pad(x_nhwc, ((0, 0), (0, 0), (0, 0), (0, cpad - cin)))
            out = _finalize_id(y2, res.reshape(n, m2d, cpad), sc2, sh2)

        # TODO(synk): keep the lane-dense (M, c_pad) layout between blocks in a
        # full network; slice only at the network output.
        return out[:, :, :planes].reshape(n, ho, wo, planes)

    # -- forward mirroring the PyTorch module's tuple interface -- #
    def forward(self, x2):
        x, prev_layer, flag, flag2, test_flag, test_flag2 = x2
        curr_layer = prev_layer
        rand_val = random.random()
        if rand_val < self.passing_prob or (
                not test_flag[self.index] and not test_flag2[self.index]):
            out = self._shortcut(x)
            flag.append(False)
            flag2.append(False)
            return (out, curr_layer, flag, flag2, test_flag, test_flag2)
        elif rand_val < self.passing_prob + self.recycling_prob or (
                test_flag[self.index] and not test_flag2[self.index]):
            # recycling branch: Python-level recursive call into prev block's forward
            out2 = prev_layer((x, curr_layer, flag, flag2,
                               [True] * (prev_layer.index + 1),
                               [True] * (prev_layer.index + 1)))
            flag.append(True)
            flag2.append(False)
            return (out2[0], curr_layer, flag, flag2, test_flag, test_flag2)
        else:
            out = self._main_path(x)
            flag.append(True)
            flag2.append(True)
            return (out, self, flag, flag2, test_flag, test_flag2)

    __call__ = forward


# ------------------------- precision-matched reference ---------------------- #

def _ref_conv(x_nhwc, w_hwio, stride, padding):
    # Same precision as the kernels: bf16 MXU inputs, f32 accumulation.
    return jax.lax.conv_general_dilated(
        x_nhwc.astype(jnp.bfloat16), w_hwio.astype(jnp.bfloat16),
        window_strides=(stride, stride),
        padding=((padding, padding), (padding, padding)),
        dimension_numbers=("NHWC", "HWIO", "NHWC"),
        preferred_element_type=jnp.float32)


def _ref_bn(y, gamma, beta):
    mean = jnp.mean(y, axis=(0, 1, 2), keepdims=True)
    var = jnp.mean((y - mean) ** 2, axis=(0, 1, 2), keepdims=True)
    return ((y - mean) * jax.lax.rsqrt(var + BN_EPS)
            * gamma.reshape(1, 1, 1, -1) + beta.reshape(1, 1, 1, -1))


def _ref_block(block, x_nhwc):
    o1 = jnp.maximum(_ref_bn(_ref_conv(x_nhwc, block.w1, block.stride, 1),
                             block.gamma1, block.beta1), 0.0)
    b2 = _ref_bn(_ref_conv(o1, block.w2, 1, 1), block.gamma2, block.beta2)
    if block.has_shortcut_conv:
        sc = _ref_bn(_ref_conv(x_nhwc, block.ws, block.stride, 0),
                     block.gamma_s, block.beta_s)
    else:
        sc = x_nhwc
    return jnp.maximum(b2 + sc, 0.0)


if __name__ == "__main__":
    random.seed(0)  # probs are 0.0 and the test flags pick the branch -> deterministic
    key = jax.random.PRNGKey(0)
    kx, kb, kx2, kb2 = jax.random.split(key, 4)

    N, Cin, H, W = 2, 4, 16, 16
    planes, stride = 8, 2

    x_nchw = jax.random.normal(kx, (N, Cin, H, W), jnp.float32)   # PyTorch-style input
    x_nhwc = jnp.transpose(x_nchw, (0, 2, 3, 1))

    # --- stride-2 block with a 1x1-conv shortcut (main branch) ---
    block = BasicBlockPallas(Cin, planes, stride=stride, index=0, key=kb)
    out_tuple = block((x_nhwc, None, [], [], [True], [True]))
    out = jax.block_until_ready(out_tuple[0])                      # (N, Ho, Wo, planes)
    assert out.shape == (N, H // stride, W // stride, planes), out.shape
    ref = _ref_block(block, x_nhwc)
    err = jnp.abs(out - ref)
    max_err, mean_err = float(jnp.max(err)), float(jnp.mean(err))
    # bf16 intermediates (y1/y2) vs the f32-statistics reference -> ~1e-2 worst case.
    assert bool(jnp.allclose(out, ref, atol=2e-2, rtol=2e-2)), \
        f"main-branch mismatch: max|err|={max_err}, mean|err|={mean_err}"
    assert mean_err < 5e-3, f"main-branch mean|err|={mean_err}"
    assert out_tuple[2] == [True] and out_tuple[3] == [True]

    # --- passing branch (shortcut only) of the same block ---
    out_pass = jax.block_until_ready(
        block((x_nhwc, None, [], [], [False], [False]))[0])
    ref_pass = _ref_bn(_ref_conv(x_nhwc, block.ws, stride, 0),
                       block.gamma_s, block.beta_s)
    assert bool(jnp.allclose(out_pass, ref_pass, atol=2e-3, rtol=2e-3)), \
        f"shortcut-branch mismatch: max|err|={float(jnp.max(jnp.abs(out_pass - ref_pass)))}"

    # --- stride-1 block with an identity shortcut (main branch) ---
    x2_nhwc = jax.random.normal(kx2, (N, H, W, planes), jnp.float32)
    block_id = BasicBlockPallas(planes, planes, stride=1, index=0, key=kb2)
    out_id = jax.block_until_ready(block_id((x2_nhwc, None, [], [], [True], [True]))[0])
    assert out_id.shape == (N, H, W, planes), out_id.shape
    ref_id = _ref_block(block_id, x2_nhwc)
    assert bool(jnp.allclose(out_id, ref_id, atol=2e-2, rtol=2e-2)), \
        f"identity-block mismatch: max|err|={float(jnp.max(jnp.abs(out_id - ref_id)))}"

    print("KERNEL_OK")
</pallas_src>

<mosaic_0001>
module attributes {stable_mosaic.version = 11 : i64} {
  func.func @_conv3x3_stats_kernel(%arg0: i32, %arg1: memref<1x4x9x9x16xbf16, #tpu.memory_space<vmem>>, %arg2: memref<9x16x128xbf16, #tpu.memory_space<vmem>>, %arg3: memref<1x64x128xbf16, #tpu.memory_space<vmem>>, %arg4: memref<1x1x128xf32, #tpu.memory_space<vmem>>, %arg5: memref<1x1x128xf32, #tpu.memory_space<vmem>>) attributes {dimension_semantics = [#tpu.dimension_semantics<parallel>], iteration_bounds = array<i64: 2>, scalar_prefetch = 0 : i64, scratch_operands = 0 : i64, tpu.core_type = #tpu.core_type<tc>, window_params = [{transform_indices = @transform_0, window_bounds = array<i64: 1, 4, 9, 9, 16>}, {pipeline_mode = #tpu.pipeline_mode<synchronous>, transform_indices = @transform_1, window_bounds = array<i64: 9, 16, 128>}, {transform_indices = @transform_2, window_bounds = array<i64: 1, 64, 128>}, {transform_indices = @transform_3, window_bounds = array<i64: 1, 1, 128>}, {transform_indices = @transform_4, window_bounds = array<i64: 1, 1, 128>}]} {
    %cst = arith.constant 0.000000e+00 : f32
    %0 = vector.broadcast %cst : f32 to vector<64x128xf32>
    %c0 = arith.constant 0 : index
    %c0_0 = arith.constant 0 : index
    %c0_1 = arith.constant 0 : index
    %c0_2 = arith.constant 0 : index
    %c0_3 = arith.constant 0 : index
    %1 = vector.load %arg1[%c0, %c0_0, %c0_1, %c0_2, %c0_3] : memref<1x4x9x9x16xbf16, #tpu.memory_space<vmem>>, vector<1x1x8x8x16xbf16>
    %2 = vector.shape_cast %1 : vector<1x1x8x8x16xbf16> to vector<8x8x16xbf16>
    %3 = arith.extf %2 : vector<8x8x16xbf16> to vector<8x8x16xf32>
    %4 = vector.shape_cast %3 : vector<8x8x16xf32> to vector<64x16xf32>
    %5 = arith.truncf %4 : vector<64x16xf32> to vector<64x16xbf16>
    %c0_4 = arith.constant 0 : index
    %c0_5 = arith.constant 0 : index
    %c0_6 = arith.constant 0 : index
    %6 = vector.load %arg2[%c0_4, %c0_5, %c0_6] : memref<9x16x128xbf16, #tpu.memory_space<vmem>>, vector<1x16x128xbf16>
    %7 = vector.shape_cast %6 : vector<1x16x128xbf16> to vector<16x128xbf16>
    %cst_7 = arith.constant dense<0.000000e+00> : vector<64x128xf32>
    %8 = tpu.matmul %5, %7, %cst_7 {dimension_numbers = #tpu.dot_dimension_numbers<[1], [0], [0], [1], [0, 0, 1, 1], [], []>} : vector<64x16xbf16>, vector<16x128xbf16>, vector<64x128xf32> -> vector<64x128xf32>
    %9 = arith.addf %0, %8 : vector<64x128xf32>
    %c0_8 = arith.constant 0 : index
    %c1 = arith.constant 1 : index
    %c0_9 = arith.constant 0 : index
    %c0_10 = arith.constant 0 : index
    %c0_11 = arith.constant 0 : index
    %10 = vector.load %arg1[%c0_8, %c1, %c0_9, %c0_10, %c0_11] : memref<1x4x9x9x16xbf16, #tpu.memory_space<vmem>>, vector<1x1x8x8x16xbf16>
    %11 = vector.shape_cast %10 : vector<1x1x8x8x16xbf16> to vector<8x8x16xbf16>
    %12 = arith.extf %11 : vector<8x8x16xbf16> to vector<8x8x16xf32>
    %13 = vector.shape_cast %12 : vector<8x8x16xf32> to vector<64x16xf32>
    %14 = arith.truncf %13 : vector<64x16xf32> to vector<64x16xbf16>
    %c1_12 = arith.constant 1 : index
    %c0_13 = arith.constant 0 : index
    %c0_14 = arith.constant 0 : index
    %15 = vector.load %arg2[%c1_12, %c0_13, %c0_14] : memref<9x16x128xbf16, #tpu.memory_space<vmem>>, vector<1x16x128xbf16>
    %16 = vector.shape_cast %15 : vector<1x16x128xbf16> to vector<16x128xbf16>
    %cst_15 = arith.constant dense<0.000000e+00> : vector<64x128xf32>
    %17 = tpu.matmul %14, %16, %cst_15 {dimension_numbers = #tpu.dot_dimension_numbers<[1], [0], [0], [1], [0, 0, 1, 1], [], []>} : vector<64x16xbf16>, vector<16x128xbf16>, vector<64x128xf32> -> vector<64x128xf32>
    %18 = arith.addf %9, %17 : vector<64x128xf32>
    %c0_16 = arith.constant 0 : index
    %c0_17 = arith.constant 0 : index
    %c0_18 = arith.constant 0 : index
    %c1_19 = arith.constant 1 : index
    %c0_20 = arith.constant 0 : index
    %19 = vector.load %arg1[%c0_16, %c0_17, %c0_18, %c1_19, %c0_20] : memref<1x4x9x9x16xbf16, #tpu.memory_space<vmem>>, vector<1x1x8x8x16xbf16>
    %20 = vector.shape_cast %19 : vector<1x1x8x8x16xbf16> to vector<8x8x16xbf16>
    %21 = arith.extf %20 : vector<8x8x16xbf16> to vector<8x8x16xf32>
    %22 = vector.shape_cast %21 : vector<8x8x16xf32> to vector<64x16xf32>
    %23 = arith.truncf %22 : vector<64x16xf32> to vector<64x16xbf16>
    %c2 = arith.constant 2 : index
    %c0_21 = arith.constant 0 : index
    %c0_22 = arith.constant 0 : index
    %24 = vector.load %arg2[%c2, %c0_21, %c0_22] : memref<9x16x128xbf16, #tpu.memory_space<vmem>>, vector<1x16x128xbf16>
    %25 = vector.shape_cast %24 : vector<1x16x128xbf16> to vector<16x128xbf16>
    %cst_23 = arith.constant dense<0.000000e+00> : vector<64x128xf32>
    %26 = tpu.matmul %23, %25, %cst_23 {dimension_numbers = #tpu.dot_dimension_numbers<[1], [0], [0], [1], [0, 0, 1, 1], [], []>} : vector<64x16xbf16>, vector<16x128xbf16>, vector<64x128xf32> -> vector<64x128xf32>
    %27 = arith.addf %18, %26 : vector<64x128xf32>
    %c0_24 = arith.constant 0 : index
    %c2_25 = arith.constant 2 : index
    %c0_26 = arith.constant 0 : index
    %c0_27 = arith.constant 0 : index
    %c0_28 = arith.constant 0 : index
    %28 = vector.load %arg1[%c0_24, %c2_25, %c0_26, %c0_27, %c0_28] : memref<1x4x9x9x16xbf16, #tpu.memory_space<vmem>>, vector<1x1x8x8x16xbf16>
    %29 = vector.shape_cast %28 : vector<1x1x8x8x16xbf16> to vector<8x8x16xbf16>
    %30 = arith.extf %29 : vector<8x8x16xbf16> to vector<8x8x16xf32>
    %31 = vector.shape_cast %30 : vector<8x8x16xf32> to vector<64x16xf32>
    %32 = arith.truncf %31 : vector<64x16xf32> to vector<64x16xbf16>
    %c3 = arith.constant 3 : index
    %c0_29 = arith.constant 0 : index
    %c0_30 = arith.constant 0 : index
    %33 = vector.load %arg2[%c3, %c0_29, %c0_30] : memref<9x16x128xbf16, #tpu.memory_space<vmem>>, vector<1x16x128xbf16>
    %34 = vector.shape_cast %33 : vector<1x16x128xbf16> to vector<16x128xbf16>
    %cst_31 = arith.constant dense<0.000000e+00> : vector<64x128xf32>
    %35 = tpu.matmul %32, %34, %cst_31 {dimension_numbers = #tpu.dot_dimension_numbers<[1], [0], [0], [1], [0, 0, 1, 1], [], []>} : vector<64x16xbf16>, vector<16x128xbf16>, vector<64x128xf32> -> vector<64x128xf32>
    %36 = arith.addf %27, %35 : vector<64x128xf32>
    %c0_32 = arith.constant 0 : index
    %c3_33 = arith.constant 3 : index
    %c0_34 = arith.constant 0 : index
    %c0_35 = arith.constant 0 : index
    %c0_36 = arith.constant 0 : index
    %37 = vector.load %arg1[%c0_32, %c3_33, %c0_34, %c0_35, %c0_36] : memref<1x4x9x9x16xbf16, #tpu.memory_space<vmem>>, vector<1x1x8x8x16xbf16>
    %38 = vector.shape_cast %37 : vector<1x1x8x8x16xbf16> to vector<8x8x16xbf16>
    %39 = arith.extf %38 : vector<8x8x16xbf16> to vector<8x8x16xf32>
    %40 = vector.shape_cast %39 : vector<8x8x16xf32> to vector<64x16xf32>
    %41 = arith.truncf %40 : vector<64x16xf32> to vector<64x16xbf16>
    %c4 = arith.constant 4 : index
    %c0_37 = arith.constant 0 : index
    %c0_38 = arith.constant 0 : index
    %42 = vector.load %arg2[%c4, %c0_37, %c0_38] : memref<9x16x128xbf16, #tpu.memory_space<vmem>>, vector<1x16x128xbf16>
    %43 = vector.shape_cast %42 : vector<1x16x128xbf16> to vector<16x128xbf16>
    %cst_39 = arith.constant dense<0.000000e+00> : vector<64x128xf32>
    %44 = tpu.matmul %41, %43, %cst_39 {dimension_numbers = #tpu.dot_dimension_numbers<[1], [0], [0], [1], [0, 0, 1, 1], [], []>} : vector<64x16xbf16>, vector<16x128xbf16>, vector<64x128xf32> -> vector<64x128xf32>
    %45 = arith.addf %36, %44 : vector<64x128xf32>
    %c0_40 = arith.constant 0 : index
    %c2_41 = arith.constant 2 : index
    %c0_42 = arith.constant 0 : index
    %c1_43 = arith.constant 1 : index
    %c0_44 = arith.constant 0 : index
    %46 = vector.load %arg1[%c0_40, %c2_41, %c0_42, %c1_43, %c0_44] : memref<1x4x9x9x16xbf16, #tpu.memory_space<vmem>>, vector<1x1x8x8x16xbf16>
    %47 = vector.shape_cast %46 : vector<1x1x8x8x16xbf16> to vector<8x8x16xbf16>
    %48 = arith.extf %47 : vector<8x8x16xbf16> to vector<8x8x16xf32>
    %49 = vector.shape_cast %48 : vector<8x8x16xf32> to vector<64x16xf32>
    %50 = arith.truncf %49 : vector<64x16xf32> to vector<64x16xbf16>
    %c5 = arith.constant 5 : index
    %c0_45 = arith.constant 0 : index
    %c0_46 = arith.constant 0 : index
    %51 = vector.load %arg2[%c5, %c0_45, %c0_46] : memref<9x16x128xbf16, #tpu.memory_space<vmem>>, vector<1x16x128xbf16>
    %52 = vector.shape_cast %51 : vector<1x16x128xbf16> to vector<16x128xbf16>
    %cst_47 = arith.constant dense<0.000000e+00> : vector<64x128xf32>
    %53 = tpu.matmul %50, %52, %cst_47 {dimension_numbers = #tpu.dot_dimension_numbers<[1], [0], [0], [1], [0, 0, 1, 1], [], []>} : vector<64x16xbf16>, vector<16x128xbf16>, vector<64x128xf32> -> vector<64x128xf32>
    %54 = arith.addf %45, %53 : vector<64x128xf32>
    %c0_48 = arith.constant 0 : index
    %c0_49 = arith.constant 0 : index
    %c1_50 = arith.constant 1 : index
    %c0_51 = arith.constant 0 : index
    %c0_52 = arith.constant 0 : index
    %55 = vector.load %arg1[%c0_48, %c0_49, %c1_50, %c0_51, %c0_52] : memref<1x4x9x9x16xbf16, #tpu.memory_space<vmem>>, vector<1x1x8x8x16xbf16>
    %56 = vector.shape_cast %55 : vector<1x1x8x8x16xbf16> to vector<8x8x16xbf16>
    %57 = arith.extf %56 : vector<8x8x16xbf16> to vector<8x8x16xf32>
    %58 = vector.shape_cast %57 : vector<8x8x16xf32> to vector<64x16xf32>
    %59 = arith.truncf %58 : vector<64x16xf32> to vector<64x16xbf16>
    %c6 = arith.constant 6 : index
    %c0_53 = arith.constant 0 : index
    %c0_54 = arith.constant 0 : index
    %60 = vector.load %arg2[%c6, %c0_53, %c0_54] : memref<9x16x128xbf16, #tpu.memory_space<vmem>>, vector<1x16x128xbf16>
    %61 = vector.shape_cast %60 : vector<1x16x128xbf16> to vector<16x128xbf16>
    %cst_55 = arith.constant dense<0.000000e+00> : vector<64x128xf32>
    %62 = tpu.matmul %59, %61, %cst_55 {dimension_numbers = #tpu.dot_dimension_numbers<[1], [0], [0], [1], [0, 0, 1, 1], [], []>} : vector<64x16xbf16>, vector<16x128xbf16>, vector<64x128xf32> -> vector<64x128xf32>
    %63 = arith.addf %54, %62 : vector<64x128xf32>
    %c0_56 = arith.constant 0 : index
    %c1_57 = arith.constant 1 : index
    %c1_58 = arith.constant 1 : index
    %c0_59 = arith.constant 0 : index
    %c0_60 = arith.constant 0 : index
    %64 = vector.load %arg1[%c0_56, %c1_57, %c1_58, %c0_59, %c0_60] : memref<1x4x9x9x16xbf16, #tpu.memory_space<vmem>>, vector<1x1x8x8x16xbf16>
    %65 = vector.shape_cast %64 : vector<1x1x8x8x16xbf16> to vector<8x8x16xbf16>
    %66 = arith.extf %65 : vector<8x8x16xbf16> to vector<8x8x16xf32>
    %67 = vector.shape_cast %66 : vector<8x8x16xf32> to vector<64x16xf32>
    %68 = arith.truncf %67 : vector<64x16xf32> to vector<64x16xbf16>
    %c7 = arith.constant 7 : index
    %c0_61 = arith.constant 0 : index
    %c0_62 = arith.constant 0 : index
    %69 = vector.load %arg2[%c7, %c0_61, %c0_62] : memref<9x16x128xbf16, #tpu.memory_space<vmem>>, vector<1x16x128xbf16>
    %70 = vector.shape_cast %69 : vector<1x16x128xbf16> to vector<16x128xbf16>
    %cst_63 = arith.constant dense<0.000000e+00> : vector<64x128xf32>
    %71 = tpu.matmul %68, %70, %cst_63 {dimension_numbers = #tpu.dot_dimension_numbers<[1], [0], [0], [1], [0, 0, 1, 1], [], []>} : vector<64x16xbf16>, vector<16x128xbf16>, vector<64x128xf32> -> vector<64x128xf32>
    %72 = arith.addf %63, %71 : vector<64x128xf32>
    %c0_64 = arith.constant 0 : index
    %c0_65 = arith.constant 0 : index
    %c1_66 = arith.constant 1 : index
    %c1_67 = arith.constant 1 : index
    %c0_68 = arith.constant 0 : index
    %73 = vector.load %arg1[%c0_64, %c0_65, %c1_66, %c1_67, %c0_68] : memref<1x4x9x9x16xbf16, #tpu.memory_space<vmem>>, vector<1x1x8x8x16xbf16>
    %74 = vector.shape_cast %73 : vector<1x1x8x8x16xbf16> to vector<8x8x16xbf16>
    %75 = arith.extf %74 : vector<8x8x16xbf16> to vector<8x8x16xf32>
    %76 = vector.shape_cast %75 : vector<8x8x16xf32> to vector<64x16xf32>
    %77 = arith.truncf %76 : vector<64x16xf32> to vector<64x16xbf16>
    %c8 = arith.constant 8 : index
    %c0_69 = arith.constant 0 : index
    %c0_70 = arith.constant 0 : index
    %78 = vector.load %arg2[%c8, %c0_69, %c0_70] : memref<9x16x128xbf16, #tpu.memory_space<vmem>>, vector<1x16x128xbf16>
    %79 = vector.shape_cast %78 : vector<1x16x128xbf16> to vector<16x128xbf16>
    %cst_71 = arith.constant dense<0.000000e+00> : vector<64x128xf32>
    %80 = tpu.matmul %77, %79, %cst_71 {dimension_numbers = #tpu.dot_dimension_numbers<[1], [0], [0], [1], [0, 0, 1, 1], [], []>} : vector<64x16xbf16>, vector<16x128xbf16>, vector<64x128xf32> -> vector<64x128xf32>
    %81 = arith.addf %72, %80 : vector<64x128xf32>
    %cst_72 = arith.constant dense<0.000000e+00> : vector<128xf32>
    %82 = vector.multi_reduction <add>, %81, %cst_72 [0] : vector<64x128xf32> to vector<128xf32>
    %83 = vector.shape_cast %82 : vector<128xf32> to vector<1x128xf32>
    %cst_73 = arith.constant 1.562500e-02 : f32
    %84 = vector.broadcast %cst_73 : f32 to vector<1x128xf32>
    %85 = arith.mulf %83, %84 : vector<1x128xf32>
    %86 = vector.broadcast %85 : vector<1x128xf32> to vector<64x128xf32>
    %87 = arith.subf %81, %86 : vector<64x128xf32>
    %c0_74 = arith.constant 0 : index
    %c0_75 = arith.constant 0 : index
    %c0_76 = arith.constant 0 : index
    %88 = vector.load %arg4[%c0_74, %c0_75, %c0_76] : memref<1x1x128xf32, #tpu.memory_space<vmem>>, vector<1x1x128xf32>
    %89 = vector.shape_cast %88 : vector<1x1x128xf32> to vector<1x128xf32>
    %90 = vector.shape_cast %83 : vector<1x128xf32> to vector<1x1x128xf32>
    tpu.vector_store %arg4[%c0_74, %c0_75, %c0_76], %90 {strides = array<i32>} : memref<1x1x128xf32, #tpu.memory_space<vmem>>, vector<1x1x128xf32>,
    %91 = arith.mulf %87, %87 : vector<64x128xf32>
    %cst_77 = arith.constant dense<0.000000e+00> : vector<128xf32>
    %92 = vector.multi_reduction <add>, %91, %cst_77 [0] : vector<64x128xf32> to vector<128xf32>
    %93 = vector.shape_cast %92 : vector<128xf32> to vector<1x128xf32>
    %c0_78 = arith.constant 0 : index
    %c0_79 = arith.constant 0 : index
    %c0_80 = arith.constant 0 : index
    %94 = vector.load %arg5[%c0_78, %c0_79, %c0_80] : memref<1x1x128xf32, #tpu.memory_space<vmem>>, vector<1x1x128xf32>
    %95 = vector.shape_cast %94 : vector<1x1x128xf32> to vector<1x128xf32>
    %96 = vector.shape_cast %93 : vector<1x128xf32> to vector<1x1x128xf32>
    tpu.vector_store %arg5[%c0_78, %c0_79, %c0_80], %96 {strides = array<i32>} : memref<1x1x128xf32, #tpu.memory_space<vmem>>, vector<1x1x128xf32>,
    %97 = arith.truncf %81 : vector<64x128xf32> to vector<64x128xbf16>
    %c0_81 = arith.constant 0 : index
    %c0_82 = arith.constant 0 : index
    %c0_83 = arith.constant 0 : index
    %98 = vector.load %arg3[%c0_81, %c0_82, %c0_83] : memref<1x64x128xbf16, #tpu.memory_space<vmem>>, vector<1x64x128xbf16>
    %99 = vector.shape_cast %98 : vector<1x64x128xbf16> to vector<64x128xbf16>
    %100 = vector.shape_cast %97 : vector<64x128xbf16> to vector<1x64x128xbf16>
    tpu.vector_store %arg3[%c0_81, %c0_82, %c0_83], %100 {strides = array<i32>} : memref<1x64x128xbf16, #tpu.memory_space<vmem>>, vector<1x64x128xbf16>,
    return
  }
  func.func @transform_0(%arg0: i32) -> (i32, i32, i32, i32, i32) {
    %c0_i32 = arith.constant 0 : i32
    %c0_i32_0 = arith.constant 0 : i32
    %c0_i32_1 = arith.constant 0 : i32
    %c0_i32_2 = arith.constant 0 : i32
    %c0_i32_3 = arith.constant 0 : i32
    return %arg0, %c0_i32, %c0_i32_0, %c0_i32_1, %c0_i32_2 : i32, i32, i32, i32, i32
  }
  func.func @transform_1(%arg0: i32) -> (i32, i32, i32) {
    %c0_i32 = arith.constant 0 : i32
    %c0_i32_0 = arith.constant 0 : i32
    %c0_i32_1 = arith.constant 0 : i32
    %c0_i32_2 = arith.constant 0 : i32
    return %c0_i32, %c0_i32_0, %c0_i32_1 : i32, i32, i32
  }
  func.func @transform_2(%arg0: i32) -> (i32, i32, i32) {
    %c0_i32 = arith.constant 0 : i32
    %c0_i32_0 = arith.constant 0 : i32
    %c0_i32_1 = arith.constant 0 : i32
    return %arg0, %c0_i32, %c0_i32_0 : i32, i32, i32
  }
  func.func @transform_3(%arg0: i32) -> (i32, i32, i32) {
    %c0_i32 = arith.constant 0 : i32
    %c0_i32_0 = arith.constant 0 : i32
    %c0_i32_1 = arith.constant 0 : i32
    return %arg0, %c0_i32, %c0_i32_0 : i32, i32, i32
  }
  func.func @transform_4(%arg0: i32) -> (i32, i32, i32) {
    %c0_i32 = arith.constant 0 : i32
    %c0_i32_0 = arith.constant 0 : i32
    %c0_i32_1 = arith.constant 0 : i32
    return %arg0, %c0_i32, %c0_i32_0 : i32, i32, i32
  }
}

</mosaic_0001>

<llo_original>
// kernel: tpu_custom_call.1
$region0: #{tpu_custom_call.1}
  #allocation0 [shape = 'u32[]', space=smem, size = 0x4, offset = 0x4, fixed_abs, tag = 'smem constant byte address 0x4 - core index']
  #allocation1 [shape = 'u32[72,128]{1,0:T(1,128)}', space=vmem, size = 0x9000, scoped, tag = 'internal scratch']
  %s0 = inlined_call_operand.vmem [shape: bf16[2,4,9,9,16], index: 0, kind: input, shape index: {}]
  %s1 = inlined_call_operand.vmem [shape: bf16[9,16,128], index: 1, kind: input, shape index: {}]
  %s2 = inlined_call_operand.hbm [shape: bf16[2,64,128], index: 2, kind: output, shape index: {0}]
  %s3 = inlined_call_operand.hbm [shape: f32[2,1,128], index: 3, kind: output, shape index: {1}]
  %s4 = inlined_call_operand.hbm [shape: f32[2,1,128], index: 4, kind: output, shape index: {2}]
  %5 = xla_tuple %s2, %s3, %s4
  %s6 = sld [smem:[#allocation0]]
  $region57: #{tpu_custom_call.1} parent=0
    _
  %s8 = ssub.s32 1, %s6
  %s9 = scalar_select 0, %s8, %s6
  $region1: #{tpu_custom_call.1} parent=0
    #allocation2 [shape = 'u8[32768]{0}', space=vmem, size = 0x8000, scoped, tag = 'output window, operand 0']
    #allocation3 [shape = 's32[2]{0}', space=sflag, size = 0x8, scoped, tag = 'scoped memory for tpu_custom_call.1']
    #allocation4 [shape = 'u8[1024]{0}', space=vmem, size = 0x400, scoped, tag = 'output window, operand 1']
    #allocation5 [shape = 's32[2]{0}', space=sflag, size = 0x8, scoped, tag = 'scoped memory for tpu_custom_call.1']
    #allocation6 [shape = 'u8[1024]{0}', space=vmem, size = 0x400, scoped, tag = 'output window, operand 2']
    %10 = vsyncpa [#allocation3], 0
    %s11 = scalar_lea.sflag [#allocation3], 1
    %12 = vsyncpa %s11, 0
    %13 = vsyncpa [#allocation5], 0
    %s14 = scalar_lea.sflag [#allocation5], 1
    %15 = vsyncpa %s14, 0
    loop: start=0, step=1, limit=4
    $region2: #{tpu_custom_call.1} parent=1 // loop_pre_header
      _
    $region3: #{tpu_custom_call.1} parent=1 // loop_header
      %s17 = sphi 0, %s21
      %p18 = scmp.ge.s32.totalorder %s17, 4
      %s27 = sphi 0, %s29
      %s30 = sphi 0, %s27
      %s31 = sphi 0, %s30
      %s47 = sphi 0, %s31
      %s51 = sphi 0, %s51
      %s53 = sphi 0, %s51
      %s54 = sphi 0, %s53
      %s68 = sphi 0, %s54
      %s74 = sphi 0, %s76
      %s77 = sphi 0, %s74
      %s78 = sphi 0, %s77
      %s94 = sphi 0, %s78
      %s100 = sphi 0, %s102
      %s103 = sphi 0, %s100
      %s104 = sphi 0, %s103
      %s120 = sphi 0, %s104
      %s126 = sphi 0, %s128
      %s129 = sphi 0, %s126
      %s130 = sphi 0, %s129
      %s146 = sphi 0, %s130
    $region4: #{tpu_custom_call.1} parent=1 // loop_header_branch
      %20 = sbr.rel (%p18) target = $region8
    $region5: #{tpu_custom_call.1} parent=1 // loop_body
      %s22 = ssub.s32 %s17, 1
      %s23 = ssub.s32 %s17, 2
      %s24 = sadd.s32 %s17, 1
      %s25 = ssub.s32 %s17, %s24
      %p26 = scmp.eq.s32.totalorder %s25, 0
      %s28 = sadd.s32 %s27, 1
      %s29 = scalar_select %p26, %s27, %s28
      %p32 = pneg %p26
      %p33 = scmp.eq.s32.totalorder %s17, 1
      %p34 = por %p32, %p33
      %p35 = scmp.ne.s32.totalorder %s27, %s30
      %p36 = scmp.eq.s32.totalorder %s17, 0
      %p37 = por %p35, %p36
      %p38 = scmp.ne.s32.totalorder %s27, %s30
      %p39 = scmp.eq.s32.totalorder %s22, 1
      %p40 = por %p38, %p39
      %p41 = scmp.ne.s32.totalorder %s30, %s31
      %p42 = scmp.eq.s32.totalorder %s22, 0
      %p43 = por %p41, %p42
      %p44 = scmp.ne.s32.totalorder %s30, %s31
      %p45 = scmp.eq.s32.totalorder %s23, 1
      %p46 = por %p44, %p45
      %p48 = scmp.ne.s32.totalorder %s31, %s47
      %p49 = scmp.eq.s32.totalorder %s23, 0
      %p50 = por %p48, %p49
      %s52 = sadd.s32 %s51, 1
      %p55 = scmp.eq.s32.totalorder %s17, 1
      %p56 = scmp.ne.s32.totalorder %s51, %s53
      %p57 = scmp.eq.s32.totalorder %s17, 0
      %p58 = por %p56, %p57
      %p59 = scmp.ne.s32.totalorder %s51, %s53
      %p60 = scmp.eq.s32.totalorder %s22, 1
      %p61 = por %p59, %p60
      %p62 = scmp.ne.s32.totalorder %s53, %s54
      %p63 = scmp.eq.s32.totalorder %s22, 0
      %p64 = por %p62, %p63
      %p65 = scmp.ne.s32.totalorder %s53, %s54
      %p66 = scmp.eq.s32.totalorder %s23, 1
      %p67 = por %p65, %p66
      %p69 = scmp.ne.s32.totalorder %s54, %s68
      %p70 = scmp.eq.s32.totalorder %s23, 0
      %p71 = por %p69, %p70
      %s72 = ssub.s32 %s17, %s24
      %p73 = scmp.eq.s32.totalorder %s72, 0
      %s75 = sadd.s32 %s74, 1
      %s76 = scalar_select %p73, %s74, %s75
      %p79 = pneg %p73
      %p80 = scmp.eq.s32.totalorder %s17, 1
      %p81 = por %p79, %p80
      %p82 = scmp.ne.s32.totalorder %s74, %s77
      %p83 = scmp.eq.s32.totalorder %s17, 0
      %p84 = por %p82, %p83
      %p85 = scmp.ne.s32.totalorder %s74, %s77
      %p86 = scmp.eq.s32.totalorder %s22, 1
      %p87 = por %p85, %p86
      %p88 = scmp.ne.s32.totalorder %s77, %s78
      %p89 = scmp.eq.s32.totalorder %s22, 0
      %p90 = por %p88, %p89
      %p91 = scmp.ne.s32.totalorder %s77, %s78
      %p92 = scmp.eq.s32.totalorder %s23, 1
      %p93 = por %p91, %p92
      %p95 = scmp.ne.s32.totalorder %s78, %s94
      %p96 = scmp.eq.s32.totalorder %s23, 0
      %p97 = por %p95, %p96
      %s98 = ssub.s32 %s17, %s24
      %p99 = scmp.eq.s32.totalorder %s98, 0
      %s101 = sadd.s32 %s100, 1
      %s102 = scalar_select %p99, %s100, %s101
      %p105 = pneg %p99
      %p106 = scmp.eq.s32.totalorder %s17, 1
      %p107 = por %p105, %p106
      %p108 = scmp.ne.s32.totalorder %s100, %s103
      %p109 = scmp.eq.s32.totalorder %s17, 0
      %p110 = por %p108, %p109
      %p111 = scmp.ne.s32.totalorder %s100, %s103
      %p112 = scmp.eq.s32.totalorder %s22, 1
      %p113 = por %p111, %p112
      %p114 = scmp.ne.s32.totalorder %s103, %s104
      %p115 = scmp.eq.s32.totalorder %s22, 0
      %p116 = por %p114, %p115
      %p117 = scmp.ne.s32.totalorder %s103, %s104
      %p118 = scmp.eq.s32.totalorder %s23, 1
      %p119 = por %p117, %p118
      %p121 = scmp.ne.s32.totalorder %s104, %s120
      %p122 = scmp.eq.s32.totalorder %s23, 0
      %p123 = por %p121, %p122
      %s124 = ssub.s32 %s17, %s24
      %p125 = scmp.eq.s32.totalorder %s124, 0
      %s127 = sadd.s32 %s126, 1
      %s128 = scalar_select %p125, %s126, %s127
      %p131 = pneg %p125
      %p132 = scmp.eq.s32.totalorder %s17, 1
      %p133 = por %p131, %p132
      %p134 = scmp.ne.s32.totalorder %s126, %s129
      %p135 = scmp.eq.s32.totalorder %s17, 0
      %p136 = por %p134, %p135
      %p137 = scmp.ne.s32.totalorder %s126, %s129
      %p138 = scmp.eq.s32.totalorder %s22, 1
      %p139 = por %p137, %p138
      %p140 = scmp.ne.s32.totalorder %s129, %s130
      %p141 = scmp.eq.s32.totalorder %s22, 0
      %p142 = por %p140, %p141
      %p143 = scmp.ne.s32.totalorder %s129, %s130
      %p144 = scmp.eq.s32.totalorder %s23, 1
      %p145 = por %p143, %p144
      %p147 = scmp.ne.s32.totalorder %s130, %s146
      %p148 = scmp.eq.s32.totalorder %s23, 0
      %p149 = por %p147, %p148
      %p150 = scmp.le.s32.totalorder 1, %s17
      %p151 = scmp.lt.s32.totalorder %s17, 3
      %p152 = pnand %p150, %p151
      %p153 = pneg %p152
      // Predicated region
      $region9: #{tpu_custom_call.1} parent=5 // pred_check
        _
      $region10: #{tpu_custom_call.1} parent=5 // pred_check_branch
        %155 = sbr.rel (%p152) target = $region12
      $region11: #{tpu_custom_call.1} parent=5 // pred_region
        %s156 = ssub.s32 %s17, 1
        // Predicated region
        $region13: #{tpu_custom_call.1} parent=11 // pred_check
          %p157 = pneg %p64
        $region14: #{tpu_custom_call.1} parent=11 // pred_check_branch
          %159 = sbr.rel (%p157) target = $region16
        $region15: #{tpu_custom_call.1} parent=11 // pred_region
          _
        $region16: #{tpu_custom_call.1} parent=11 // pred_fallthru
          _
      $region12: #{tpu_custom_call.1} parent=5 // pred_fallthru
        _
      %p160 = scmp.lt.s32.totalorder %s17, 2
      // Predicated region
      $region17: #{tpu_custom_call.1} parent=5 // pred_check
        %p161 = pneg %p160
      $region18: #{tpu_custom_call.1} parent=5 // pred_check_branch
        %163 = sbr.rel (%p161) target = $region20
      $region19: #{tpu_custom_call.1} parent=5 // pred_region
        // Predicated region
        $region21: #{tpu_custom_call.1} parent=19 // pred_check
          %p164 = pneg %p37
        $region22: #{tpu_custom_call.1} parent=19 // pred_check_branch
          %166 = sbr.rel (%p164) target = $region24
        $region23: #{tpu_custom_call.1} parent=19 // pred_region
          %p167 = scmp.lt.s32.totalorder %s17, 1
          %s168 = scalar_select %p167, %s17, 1
          %s169 = smul.addr %s168, 72
          %s170 = smul.addr %s169, 4
          %s171 = scalar_lea.vmem %s0, %s170
        $region24: #{tpu_custom_call.1} parent=19 // pred_fallthru
          _
      $region20: #{tpu_custom_call.1} parent=5 // pred_fallthru
        _
      %p172 = scmp.le.s32.totalorder 1, %s17
      %p173 = scmp.lt.s32.totalorder %s17, 3
      %p174 = pnand %p172, %p173
      %p175 = pneg %p174
      // Predicated region
      $region25: #{tpu_custom_call.1} parent=5 // pred_check
        _
      $region26: #{tpu_custom_call.1} parent=5 // pred_check_branch
        %177 = sbr.rel (%p174) target = $region28
      $region27: #{tpu_custom_call.1} parent=5 // pred_region
        %s178 = ssub.s32 %s17, 1
        %p179 = scmp.lt.s32.totalorder %s22, 1
        %s180 = scalar_select %p179, %s22, 1
        %s181 = smul.addr %s180, 72
        %s182 = smul.addr %s181, 4
        %s183 = scalar_lea.vmem %s0, %s182
        %p184 = pneg %p43
        %p185 = pneg %p40
        %p186 = pneg %p64
        %p187 = pneg %p61
        %p188 = pneg %p90
        %p189 = pneg %p87
        %s190 = sand.u32 %s77, 1
        %s191 = scalar_lea.sflag [#allocation3], %s190
        %s192 = sand.u32 %s77, 1
        %s193 = smul.addr %s192, 32
        %s194 = scalar_lea.vmem [#allocation2], %s193
        %p195 = pneg %p116
        %p196 = pneg %p113
        %s197 = sand.u32 %s22, 1
        %s198 = scalar_lea.sflag [#allocation5], %s197
        %s199 = sand.u32 %s103, 1
        %s200 = scalar_lea.vmem [#allocation4], %s199
        %p201 = pneg %p142
        %p202 = pneg %p139
        %s203 = sand.u32 %s22, 1
        %s204 = scalar_lea.sflag [#allocation5], %s203
        %s205 = sand.u32 %s129, 1
        %s206 = scalar_lea.vmem [#allocation6], %s205
        %p207 = scmp.lt.s32.totalorder %s22, 1
        %s208 = scalar_select %p207, %s22, 1
        %s209 = smul.addr %s208, 72
        %s210 = smul.addr %s209, 4
        %s211 = scalar_lea.vmem %s0, %s210
        %v213 = vld [vmem:[%s211] sm:$0xf]
        %v214 = vld [vmem:[%s211 + $0x8] sm:$0xf]
        %v215 = vld [vmem:[%s211 + $0x10] sm:$0xf]
        %v216 = vld [vmem:[%s211 + $0x18] sm:$0xf]
        %v217 = vld [vmem:[%s211 + $0x20] sm:$0xf]
        %v218 = vld [vmem:[%s211 + $0x28] sm:$0xf]
        %v219 = vld [vmem:[%s211 + $0x30] sm:$0xf]
        %v220 = vld [vmem:[%s211 + $0x38] sm:$0xf]
        %v221 = vunpack.c.l.bf16 %v213
        %v222 = vunpack.c.l.bf16 %v214
        %v223 = vunpack.c.l.bf16 %v215
        %v224 = vunpack.c.l.bf16 %v216
        %v225 = vunpack.c.l.bf16 %v217
        %v226 = vunpack.c.l.bf16 %v218
        %v227 = vunpack.c.l.bf16 %v219
        %v228 = vunpack.c.l.bf16 %v220
        %v229 = vpack.c.bf16 %v222, %v221
        %v230 = vpack.c.bf16 %v224, %v223
        %v231 = vpack.c.bf16 %v226, %v225
        %v232 = vpack.c.bf16 %v228, %v227
        %v233 = vld [vmem:[%s1] sm:$0xf]
        %v234 = vld [vmem:[%s1 + $0x4] sm:$0xf]
        %s235 = scalar_lea.vmem %s211, 72
        %v236 = vld [vmem:[%s235] sm:$0xf]
        %v237 = vld [vmem:[%s235 + $0x8] sm:$0xf]
        %v238 = vld [vmem:[%s235 + $0x10] sm:$0xf]
        %v239 = vld [vmem:[%s235 + $0x18] sm:$0xf]
        %v240 = vld [vmem:[%s235 + $0x20] sm:$0xf]
        %v241 = vld [vmem:[%s235 + $0x28] sm:$0xf]
        %v242 = vld [vmem:[%s235 + $0x30] sm:$0xf]
        %v243 = vld [vmem:[%s235 + $0x38] sm:$0xf]
        %v244 = vunpack.c.l.bf16 %v236
        %v245 = vunpack.c.l.bf16 %v237
        %v246 = vunpack.c.l.bf16 %v238
        %v247 = vunpack.c.l.bf16 %v239
        %v248 = vunpack.c.l.bf16 %v240
        %v249 = vunpack.c.l.bf16 %v241
        %v250 = vunpack.c.l.bf16 %v242
        %v251 = vunpack.c.l.bf16 %v243
        %v252 = vpack.c.bf16 %v245, %v244
        %v253 = vpack.c.bf16 %v247, %v246
        %v254 = vpack.c.bf16 %v249, %v248
        %v255 = vpack.c.bf16 %v251, %v250
        %s256 = scalar_lea.vmem %s1, 8
        %v257 = vld [vmem:[%s256] sm:$0xf]
        %v258 = vld [vmem:[%s256 + $0x4] sm:$0xf]
        %v261 = vunpack.c.l.b16 %v257
        %v262 = vunpack.c.l.b16 %v258
        %v263 = vpack.c.b16 %v262, %v261
        %vm265 = vcmask 130048
        %v267 = vsel %vm265, %v252, 0
        %v270 = vsel %vm265, %v253, 0
        %v273 = vsel %vm265, %v254, 0
        %v276 = vsel %vm265, %v255, 0
        %278 = vmatpush.bf16.msra.mxu0 0
        %279 = vmatpush.bf16.msra.mxu0 0
        %280 = vmatpush.bf16.msra.mxu0 0
        %281 = vmatpush.bf16.msra.mxu0 0
        %282 = vmatpush.bf16.msra.mxu0 0
        %283 = vmatpush.bf16.msra.mxu0 0
        %284 = vmatpush.bf16.msra.mxu0 0
        %285 = vmatpush.bf16.msra.mxu0 %v263
        %286 = vmatmul.bf16.gmra.mxu0 %v267
        %v287 = vpop.f32.mrf.mxu0
        %v288 = vadd.f32 0.0, %v287
        %v289 = vpop.f32.mrf.mxu0
        %v290 = vadd.f32 0.0, %v289
        %291 = vmatmul.bf16.gmra.mxu0 %v270
        %v292 = vpop.f32.mrf.mxu0
        %v293 = vadd.f32 0.0, %v292
        %v294 = vpop.f32.mrf.mxu0
        %v295 = vadd.f32 0.0, %v294
        %296 = vmatmul.bf16.gmra.mxu0 %v273
        %v297 = vpop.f32.mrf.mxu0
        %v298 = vadd.f32 0.0, %v297
        %v299 = vpop.f32.mrf.mxu0
        %v300 = vadd.f32 0.0, %v299
        %301 = vmatmul.bf16.gmra.mxu0 %v276
        %v302 = vpop.f32.mrf.mxu0
        %v303 = vadd.f32 0.0, %v302
        %v304 = vpop.f32.mrf.mxu0
        %v305 = vadd.f32 0.0, %v304
        %306 = vdwg.mxu0
        %v309 = vunpack.c.l.b16 %v233
        %v310 = vunpack.c.l.b16 %v234
        %v311 = vpack.c.b16 %v310, %v309
        %v314 = vsel %vm265, %v229, 0
        %v317 = vsel %vm265, %v230, 0
        %v320 = vsel %vm265, %v231, 0
        %v323 = vsel %vm265, %v232, 0
        %325 = vmatpush.bf16.msra.mxu0 0
        %326 = vmatpush.bf16.msra.mxu0 0
        %327 = vmatpush.bf16.msra.mxu0 0
        %328 = vmatpush.bf16.msra.mxu0 0
        %329 = vmatpush.bf16.msra.mxu0 0
        %330 = vmatpush.bf16.msra.mxu0 0
        %331 = vmatpush.bf16.msra.mxu0 0
        %332 = vmatpush.bf16.msra.mxu0 %v311
        %333 = vmatmul.bf16.gmra.mxu0 %v314
        %v334 = vpop.f32.mrf.mxu0
        %v335 = vadd.f32 %v288, %v334
        %v336 = vpop.f32.mrf.mxu0
        %v337 = vadd.f32 %v290, %v336
        %338 = vmatmul.bf16.gmra.mxu0 %v317
        %v339 = vpop.f32.mrf.mxu0
        %v340 = vadd.f32 %v293, %v339
        %v341 = vpop.f32.mrf.mxu0
        %v342 = vadd.f32 %v295, %v341
        %343 = vmatmul.bf16.gmra.mxu0 %v320
        %v344 = vpop.f32.mrf.mxu0
        %v345 = vadd.f32 %v298, %v344
        %v346 = vpop.f32.mrf.mxu0
        %v347 = vadd.f32 %v300, %v346
        %348 = vmatmul.bf16.gmra.mxu0 %v323
        %v349 = vpop.f32.mrf.mxu0
        %v350 = vadd.f32 %v303, %v349
        %v351 = vpop.f32.mrf.mxu0
        %v352 = vadd.f32 %v305, %v351
        %353 = vdwg.mxu0
        %v354 = vld [vmem:[%s211] sm:$0xf]
        %v355 = vld [vmem:[%s211 + $0x4] sm:$0x1]
        %v356 = vld [vmem:[%s211 + $0x8] sm:$0xf]
        %v357 = vld [vmem:[%s211 + $0xc] sm:$0x1]
        %v358 = vld [vmem:[%s211 + $0x10] sm:$0xf]
        %v359 = vld [vmem:[%s211 + $0x14] sm:$0x1]
        %v360 = vld [vmem:[%s211 + $0x18] sm:$0xf]
        %v361 = vld [vmem:[%s211 + $0x1c] sm:$0x1]
        %v362 = vld [vmem:[%s211 + $0x20] sm:$0xf]
        %v363 = vld [vmem:[%s211 + $0x24] sm:$0x1]
        %v364 = vld [vmem:[%s211 + $0x28] sm:$0xf]
        %v365 = vld [vmem:[%s211 + $0x2c] sm:$0x1]
        %v366 = vld [vmem:[%s211 + $0x30] sm:$0xf]
        %v367 = vld [vmem:[%s211 + $0x34] sm:$0x1]
        %v368 = vld [vmem:[%s211 + $0x38] sm:$0xf]
        %v369 = vld [vmem:[%s211 + $0x3c] sm:$0x1]
        %v370 = vunpack.c.l.bf16 %v354
        %v371 = vunpack.c.l.bf16 %v355
        %v372 = vunpack.c.l.bf16 %v356
        %v373 = vunpack.c.l.bf16 %v357
        %v374 = vunpack.c.l.bf16 %v358
        %v375 = vunpack.c.l.bf16 %v359
        %v376 = vunpack.c.l.bf16 %v360
        %v377 = vunpack.c.l.bf16 %v361
        %v378 = vunpack.c.l.bf16 %v362
        %v379 = vunpack.c.l.bf16 %v363
        %v380 = vunpack.c.l.bf16 %v364
        %v381 = vunpack.c.l.bf16 %v365
        %v382 = vunpack.c.l.bf16 %v366
        %v383 = vunpack.c.l.bf16 %v367
        %v384 = vunpack.c.l.bf16 %v368
        %v385 = vunpack.c.l.bf16 %v369
        %vm402 = vcmask 1046528
        %v403 = vrot.slane %v370, 1
        %v404 = vrot.slane %v371, 1
        %v405 = vsel %vm402, %v403, %v404
        %v406 = vrot.slane %v372, 1
        %v407 = vrot.slane %v373, 1
        %v408 = vsel %vm402, %v406, %v407
        %v409 = vrot.slane %v374, 1
        %v410 = vrot.slane %v375, 1
        %v411 = vsel %vm402, %v409, %v410
        %v412 = vrot.slane %v376, 1
        %v413 = vrot.slane %v377, 1
        %v414 = vsel %vm402, %v412, %v413
        %v415 = vrot.slane %v378, 1
        %v416 = vrot.slane %v379, 1
        %v417 = vsel %vm402, %v415, %v416
        %v418 = vrot.slane %v380, 1
        %v419 = vrot.slane %v381, 1
        %v420 = vsel %vm402, %v418, %v419
        %v421 = vrot.slane %v382, 1
        %v422 = vrot.slane %v383, 1
        %v423 = vsel %vm402, %v421, %v422
        %v424 = vrot.slane %v384, 1
        %v425 = vrot.slane %v385, 1
        %v426 = vsel %vm402, %v424, %v425
        %v435 = vpack.c.bf16 %v408, %v405
        %v436 = vpack.c.bf16 %v414, %v411
        %v437 = vpack.c.bf16 %v420, %v417
        %v438 = vpack.c.bf16 %v426, %v423
        %s439 = scalar_lea.vmem %s1, 16
        %v440 = vld [vmem:[%s439] sm:$0xf]
        %v441 = vld [vmem:[%s439 + $0x4] sm:$0xf]
        %v444 = vunpack.c.l.b16 %v440
        %v445 = vunpack.c.l.b16 %v441
        %v446 = vpack.c.b16 %v445, %v444
        %v449 = vsel %vm265, %v435, 0
        %v452 = vsel %vm265, %v436, 0
        %v455 = vsel %vm265, %v437, 0
        %v458 = vsel %vm265, %v438, 0
        %460 = vmatpush.bf16.msra.mxu0 0
        %461 = vmatpush.bf16.msra.mxu0 0
        %462 = vmatpush.bf16.msra.mxu0 0
        %463 = vmatpush.bf16.msra.mxu0 0
        %464 = vmatpush.bf16.msra.mxu0 0
        %465 = vmatpush.bf16.msra.mxu0 0
        %466 = vmatpush.bf16.msra.mxu0 0
        %467 = vmatpush.bf16.msra.mxu0 %v446
        %468 = vmatmul.bf16.gmra.mxu0 %v449
        %v469 = vpop.f32.mrf.mxu0
        %v470 = vadd.f32 0.0, %v469
        %v471 = vpop.f32.mrf.mxu0
        %v472 = vadd.f32 0.0, %v471
        %473 = vmatmul.bf16.gmra.mxu0 %v452
        %v474 = vpop.f32.mrf.mxu0
        %v475 = vadd.f32 0.0, %v474
        %v476 = vpop.f32.mrf.mxu0
        %v477 = vadd.f32 0.0, %v476
        %478 = vmatmul.bf16.gmra.mxu0 %v455
        %v479 = vpop.f32.mrf.mxu0
        %v480 = vadd.f32 0.0, %v479
        %v481 = vpop.f32.mrf.mxu0
        %v482 = vadd.f32 0.0, %v481
        %483 = vmatmul.bf16.gmra.mxu0 %v458
        %v484 = vpop.f32.mrf.mxu0
        %v485 = vadd.f32 0.0, %v484
        %v486 = vpop.f32.mrf.mxu0
        %v487 = vadd.f32 0.0, %v486
        %488 = vdwg.mxu0
        %v489 = vadd.f32 %v335, %v470
        %v490 = vadd.f32 %v337, %v472
        %v491 = vadd.f32 %v340, %v475
        %v492 = vadd.f32 %v342, %v477
        %v493 = vadd.f32 %v345, %v480
        %v494 = vadd.f32 %v347, %v482
        %v495 = vadd.f32 %v350, %v485
        %v496 = vadd.f32 %v352, %v487
        %s497 = scalar_lea.vmem %s211, 144
        %v498 = vld [vmem:[%s497] sm:$0xf]
        %v499 = vld [vmem:[%s497 + $0x8] sm:$0xf]
        %v500 = vld [vmem:[%s497 + $0x10] sm:$0xf]
        %v501 = vld [vmem:[%s497 + $0x18] sm:$0xf]
        %v502 = vld [vmem:[%s497 + $0x20] sm:$0xf]
        %v503 = vld [vmem:[%s497 + $0x28] sm:$0xf]
        %v504 = vld [vmem:[%s497 + $0x30] sm:$0xf]
        %v505 = vld [vmem:[%s497 + $0x38] sm:$0xf]
        %v506 = vunpack.c.l.bf16 %v498
        %v507 = vunpack.c.l.bf16 %v499
        %v508 = vunpack.c.l.bf16 %v500
        %v509 = vunpack.c.l.bf16 %v501
        %v510 = vunpack.c.l.bf16 %v502
        %v511 = vunpack.c.l.bf16 %v503
        %v512 = vunpack.c.l.bf16 %v504
        %v513 = vunpack.c.l.bf16 %v505
        %v514 = vpack.c.bf16 %v507, %v506
        %v515 = vpack.c.bf16 %v509, %v508
        %v516 = vpack.c.bf16 %v511, %v510
        %v517 = vpack.c.bf16 %v513, %v512
        %s518 = scalar_lea.vmem %s1, 24
        %v519 = vld [vmem:[%s518] sm:$0xf]
        %v520 = vld [vmem:[%s518 + $0x4] sm:$0xf]
        %v523 = vunpack.c.l.b16 %v519
        %v524 = vunpack.c.l.b16 %v520
        %v525 = vpack.c.b16 %v524, %v523
        %v528 = vsel %vm265, %v514, 0
        %v531 = vsel %vm265, %v515, 0
        %v534 = vsel %vm265, %v516, 0
        %v537 = vsel %vm265, %v517, 0
        %539 = vmatpush.bf16.msra.mxu0 0
        %540 = vmatpush.bf16.msra.mxu0 0
        %541 = vmatpush.bf16.msra.mxu0 0
        %542 = vmatpush.bf16.msra.mxu0 0
        %543 = vmatpush.bf16.msra.mxu0 0
        %544 = vmatpush.bf16.msra.mxu0 0
        %545 = vmatpush.bf16.msra.mxu0 0
        %546 = vmatpush.bf16.msra.mxu0 %v525
        %547 = vmatmul.bf16.gmra.mxu0 %v528
        %v548 = vpop.f32.mrf.mxu0
        %v549 = vadd.f32 0.0, %v548
        %v550 = vpop.f32.mrf.mxu0
        %v551 = vadd.f32 0.0, %v550
        %552 = vmatmul.bf16.gmra.mxu0 %v531
        %v553 = vpop.f32.mrf.mxu0
        %v554 = vadd.f32 0.0, %v553
        %v555 = vpop.f32.mrf.mxu0
        %v556 = vadd.f32 0.0, %v555
        %557 = vmatmul.bf16.gmra.mxu0 %v534
        %v558 = vpop.f32.mrf.mxu0
        %v559 = vadd.f32 0.0, %v558
        %v560 = vpop.f32.mrf.mxu0
        %v561 = vadd.f32 0.0, %v560
        %562 = vmatmul.bf16.gmra.mxu0 %v537
        %v563 = vpop.f32.mrf.mxu0
        %v564 = vadd.f32 0.0, %v563
        %v565 = vpop.f32.mrf.mxu0
        %v566 = vadd.f32 0.0, %v565
        %567 = vdwg.mxu0
        %v568 = vadd.f32 %v489, %v549
        %v569 = vadd.f32 %v490, %v551
        %v570 = vadd.f32 %v491, %v554
        %v571 = vadd.f32 %v492, %v556
        %v572 = vadd.f32 %v493, %v559
        %v573 = vadd.f32 %v494, %v561
        %v574 = vadd.f32 %v495, %v564
        %v575 = vadd.f32 %v496, %v566
        %s576 = scalar_lea.vmem %s211, 216
        %v577 = vld [vmem:[%s576] sm:$0xf]
        %v578 = vld [vmem:[%s576 + $0x8] sm:$0xf]
        %v579 = vld [vmem:[%s576 + $0x10] sm:$0xf]
        %v580 = vld [vmem:[%s576 + $0x18] sm:$0xf]
        %v581 = vld [vmem:[%s576 + $0x20] sm:$0xf]
        %v582 = vld [vmem:[%s576 + $0x28] sm:$0xf]
        %v583 = vld [vmem:[%s576 + $0x30] sm:$0xf]
        %v584 = vld [vmem:[%s576 + $0x38] sm:$0xf]
        %v585 = vunpack.c.l.bf16 %v577
        %v586 = vunpack.c.l.bf16 %v578
        %v587 = vunpack.c.l.bf16 %v579
        %v588 = vunpack.c.l.bf16 %v580
        %v589 = vunpack.c.l.bf16 %v581
        %v590 = vunpack.c.l.bf16 %v582
        %v591 = vunpack.c.l.bf16 %v583
        %v592 = vunpack.c.l.bf16 %v584
        %v593 = vpack.c.bf16 %v586, %v585
        %v594 = vpack.c.bf16 %v588, %v587
        %v595 = vpack.c.bf16 %v590, %v589
        %v596 = vpack.c.bf16 %v592, %v591
        %s597 = scalar_lea.vmem %s1, 32
        %v598 = vld [vmem:[%s597] sm:$0xf]
        %v599 = vld [vmem:[%s597 + $0x4] sm:$0xf]
        %v602 = vunpack.c.l.b16 %v598
        %v603 = vunpack.c.l.b16 %v599
        %v604 = vpack.c.b16 %v603, %v602
        %v607 = vsel %vm265, %v593, 0
        %v610 = vsel %vm265, %v594, 0
        %v613 = vsel %vm265, %v595, 0
        %v616 = vsel %vm265, %v596, 0
        %618 = vmatpush.bf16.msra.mxu0 0
        %619 = vmatpush.bf16.msra.mxu0 0
        %620 = vmatpush.bf16.msra.mxu0 0
        %621 = vmatpush.bf16.msra.mxu0 0
        %622 = vmatpush.bf16.msra.mxu0 0
        %623 = vmatpush.bf16.msra.mxu0 0
        %624 = vmatpush.bf16.msra.mxu0 0
        %625 = vmatpush.bf16.msra.mxu0 %v604
        %626 = vmatmul.bf16.gmra.mxu0 %v607
        %v627 = vpop.f32.mrf.mxu0
        %v628 = vadd.f32 0.0, %v627
        %v629 = vpop.f32.mrf.mxu0
        %v630 = vadd.f32 0.0, %v629
        %631 = vmatmul.bf16.gmra.mxu0 %v610
        %v632 = vpop.f32.mrf.mxu0
        %v633 = vadd.f32 0.0, %v632
        %v634 = vpop.f32.mrf.mxu0
        %v635 = vadd.f32 0.0, %v634
        %636 = vmatmul.bf16.gmra.mxu0 %v613
        %v637 = vpop.f32.mrf.mxu0
        %v638 = vadd.f32 0.0, %v637
        %v639 = vpop.f32.mrf.mxu0
        %v640 = vadd.f32 0.0, %v639
        %641 = vmatmul.bf16.gmra.mxu0 %v616
        %v642 = vpop.f32.mrf.mxu0
        %v643 = vadd.f32 0.0, %v642
        %v644 = vpop.f32.mrf.mxu0
        %v645 = vadd.f32 0.0, %v644
        %646 = vdwg.mxu0
        %v647 = vadd.f32 %v568, %v628
        %v648 = vadd.f32 %v569, %v630
        %v649 = vadd.f32 %v570, %v633
        %v650 = vadd.f32 %v571, %v635
        %v651 = vadd.f32 %v572, %v638
        %v652 = vadd.f32 %v573, %v640
        %v653 = vadd.f32 %v574, %v643
        %v654 = vadd.f32 %v575, %v645
        %v655 = vld [vmem:[%s497] sm:$0xf]
        %v656 = vld [vmem:[%s497 + $0x4] sm:$0x1]
        %v657 = vld [vmem:[%s497 + $0x8] sm:$0xf]
        %v658 = vld [vmem:[%s497 + $0xc] sm:$0x1]
        %v659 = vld [vmem:[%s497 + $0x10] sm:$0xf]
        %v660 = vld [vmem:[%s497 + $0x14] sm:$0x1]
        %v661 = vld [vmem:[%s497 + $0x18] sm:$0xf]
        %v662 = vld [vmem:[%s497 + $0x1c] sm:$0x1]
        %v663 = vld [vmem:[%s497 + $0x20] sm:$0xf]
        %v664 = vld [vmem:[%s497 + $0x24] sm:$0x1]
        %v665 = vld [vmem:[%s497 + $0x28] sm:$0xf]
        %v666 = vld [vmem:[%s497 + $0x2c] sm:$0x1]
        %v667 = vld [vmem:[%s497 + $0x30] sm:$0xf]
        %v668 = vld [vmem:[%s497 + $0x34] sm:$0x1]
        %v669 = vld [vmem:[%s497 + $0x38] sm:$0xf]
        %v670 = vld [vmem:[%s497 + $0x3c] sm:$0x1]
        %v671 = vunpack.c.l.bf16 %v655
        %v672 = vunpack.c.l.bf16 %v656
        %v673 = vunpack.c.l.bf16 %v657
        %v674 = vunpack.c.l.bf16 %v658
        %v675 = vunpack.c.l.bf16 %v659
        %v676 = vunpack.c.l.bf16 %v660
        %v677 = vunpack.c.l.bf16 %v661
        %v678 = vunpack.c.l.bf16 %v662
        %v679 = vunpack.c.l.bf16 %v663
        %v680 = vunpack.c.l.bf16 %v664
        %v681 = vunpack.c.l.bf16 %v665
        %v682 = vunpack.c.l.bf16 %v666
        %v683 = vunpack.c.l.bf16 %v667
        %v684 = vunpack.c.l.bf16 %v668
        %v685 = vunpack.c.l.bf16 %v669
        %v686 = vunpack.c.l.bf16 %v670
        %v703 = vrot.slane %v671, 1
        %v704 = vrot.slane %v672, 1
        %v705 = vsel %vm402, %v703, %v704
        %v706 = vrot.slane %v673, 1
        %v707 = vrot.slane %v674, 1
        %v708 = vsel %vm402, %v706, %v707
        %v709 = vrot.slane %v675, 1
        %v710 = vrot.slane %v676, 1
        %v711 = vsel %vm402, %v709, %v710
        %v712 = vrot.slane %v677, 1
        %v713 = vrot.slane %v678, 1
        %v714 = vsel %vm402, %v712, %v713
        %v715 = vrot.slane %v679, 1
        %v716 = vrot.slane %v680, 1
        %v717 = vsel %vm402, %v715, %v716
        %v718 = vrot.slane %v681, 1
        %v719 = vrot.slane %v682, 1
        %v720 = vsel %vm402, %v718, %v719
        %v721 = vrot.slane %v683, 1
        %v722 = vrot.slane %v684, 1
        %v723 = vsel %vm402, %v721, %v722
        %v724 = vrot.slane %v685, 1
        %v725 = vrot.slane %v686, 1
        %v726 = vsel %vm402, %v724, %v725
        %v735 = vpack.c.bf16 %v708, %v705
        %v736 = vpack.c.bf16 %v714, %v711
        %v737 = vpack.c.bf16 %v720, %v717
        %v738 = vpack.c.bf16 %v726, %v723
        %s739 = scalar_lea.vmem %s1, 40
        %v740 = vld [vmem:[%s739] sm:$0xf]
        %v741 = vld [vmem:[%s739 + $0x4] sm:$0xf]
        %v744 = vunpack.c.l.b16 %v740
        %v745 = vunpack.c.l.b16 %v741
        %v746 = vpack.c.b16 %v745, %v744
        %v749 = vsel %vm265, %v735, 0
        %v752 = vsel %vm265, %v736, 0
        %v755 = vsel %vm265, %v737, 0
        %v758 = vsel %vm265, %v738, 0
        %760 = vmatpush.bf16.msra.mxu0 0
        %761 = vmatpush.bf16.msra.mxu0 0
        %762 = vmatpush.bf16.msra.mxu0 0
        %763 = vmatpush.bf16.msra.mxu0 0
        %764 = vmatpush.bf16.msra.mxu0 0
        %765 = vmatpush.bf16.msra.mxu0 0
        %766 = vmatpush.bf16.msra.mxu0 0
        %767 = vmatpush.bf16.msra.mxu0 %v746
        %768 = vmatmul.bf16.gmra.mxu0 %v749
        %v769 = vpop.f32.mrf.mxu0
        %v770 = vadd.f32 0.0, %v769
        %v771 = vpop.f32.mrf.mxu0
        %v772 = vadd.f32 0.0, %v771
        %773 = vmatmul.bf16.gmra.mxu0 %v752
        %v774 = vpop.f32.mrf.mxu0
        %v775 = vadd.f32 0.0, %v774
        %v776 = vpop.f32.mrf.mxu0
        %v777 = vadd.f32 0.0, %v776
        %778 = vmatmul.bf16.gmra.mxu0 %v755
        %v779 = vpop.f32.mrf.mxu0
        %v780 = vadd.f32 0.0, %v779
        %v781 = vpop.f32.mrf.mxu0
        %v782 = vadd.f32 0.0, %v781
        %783 = vmatmul.bf16.gmra.mxu0 %v758
        %v784 = vpop.f32.mrf.mxu0
        %v785 = vadd.f32 0.0, %v784
        %v786 = vpop.f32.mrf.mxu0
        %v787 = vadd.f32 0.0, %v786
        %788 = vdwg.mxu0
        %v789 = vadd.f32 %v647, %v770
        %v790 = vadd.f32 %v648, %v772
        %v791 = vadd.f32 %v649, %v775
        %v792 = vadd.f32 %v650, %v777
        %v793 = vadd.f32 %v651, %v780
        %v794 = vadd.f32 %v652, %v782
        %v795 = vadd.f32 %v653, %v785
        %v796 = vadd.f32 %v654, %v787
        %s797 = scalar_lea.vmem %s211, 8
        %v798 = vld [vmem:[%s797] sm:$0xf]
        %v799 = vld [vmem:[%s797 + $0x8] sm:$0xf]
        %v800 = vld [vmem:[%s797 + $0x10] sm:$0xf]
        %v801 = vld [vmem:[%s797 + $0x18] sm:$0xf]
        %v802 = vld [vmem:[%s797 + $0x20] sm:$0xf]
        %v803 = vld [vmem:[%s797 + $0x28] sm:$0xf]
        %v804 = vld [vmem:[%s797 + $0x30] sm:$0xf]
        %v805 = vld [vmem:[%s797 + $0x38] sm:$0xf]
        %v806 = vunpack.c.l.bf16 %v798
        %v807 = vunpack.c.l.bf16 %v799
        %v808 = vunpack.c.l.bf16 %v800
        %v809 = vunpack.c.l.bf16 %v801
        %v810 = vunpack.c.l.bf16 %v802
        %v811 = vunpack.c.l.bf16 %v803
        %v812 = vunpack.c.l.bf16 %v804
        %v813 = vunpack.c.l.bf16 %v805
        %v814 = vpack.c.bf16 %v807, %v806
        %v815 = vpack.c.bf16 %v809, %v808
        %v816 = vpack.c.bf16 %v811, %v810
        %v817 = vpack.c.bf16 %v813, %v812
        %s818 = scalar_lea.vmem %s1, 48
        %v819 = vld [vmem:[%s818] sm:$0xf]
        %v820 = vld [vmem:[%s818 + $0x4] sm:$0xf]
        %v823 = vunpack.c.l.b16 %v819
        %v824 = vunpack.c.l.b16 %v820
        %v825 = vpack.c.b16 %v824, %v823
        %v828 = vsel %vm265, %v814, 0
        %v831 = vsel %vm265, %v815, 0
        %v834 = vsel %vm265, %v816, 0
        %v837 = vsel %vm265, %v817, 0
        %839 = vmatpush.bf16.msra.mxu0 0
        %840 = vmatpush.bf16.msra.mxu0 0
        %841 = vmatpush.bf16.msra.mxu0 0
        %842 = vmatpush.bf16.msra.mxu0 0
        %843 = vmatpush.bf16.msra.mxu0 0
        %844 = vmatpush.bf16.msra.mxu0 0
        %845 = vmatpush.bf16.msra.mxu0 0
        %846 = vmatpush.bf16.msra.mxu0 %v825
        %847 = vmatmul.bf16.gmra.mxu0 %v828
        %v848 = vpop.f32.mrf.mxu0
        %v849 = vadd.f32 0.0, %v848
        %v850 = vpop.f32.mrf.mxu0
        %v851 = vadd.f32 0.0, %v850
        %852 = vmatmul.bf16.gmra.mxu0 %v831
        %v853 = vpop.f32.mrf.mxu0
        %v854 = vadd.f32 0.0, %v853
        %v855 = vpop.f32.mrf.mxu0
        %v856 = vadd.f32 0.0, %v855
        %857 = vmatmul.bf16.gmra.mxu0 %v834
        %v858 = vpop.f32.mrf.mxu0
        %v859 = vadd.f32 0.0, %v858
        %v860 = vpop.f32.mrf.mxu0
        %v861 = vadd.f32 0.0, %v860
        %862 = vmatmul.bf16.gmra.mxu0 %v837
        %v863 = vpop.f32.mrf.mxu0
        %v864 = vadd.f32 0.0, %v863
        %v865 = vpop.f32.mrf.mxu0
        %v866 = vadd.f32 0.0, %v865
        %867 = vdwg.mxu0
        %v868 = vadd.f32 %v789, %v849
        %v869 = vadd.f32 %v790, %v851
        %v870 = vadd.f32 %v791, %v854
        %v871 = vadd.f32 %v792, %v856
        %v872 = vadd.f32 %v793, %v859
        %v873 = vadd.f32 %v794, %v861
        %v874 = vadd.f32 %v795, %v864
        %v875 = vadd.f32 %v796, %v866
        %s876 = scalar_lea.vmem %s211, 80
        %v877 = vld [vmem:[%s876] sm:$0xf]
        %v878 = vld [vmem:[%s876 + $0x8] sm:$0xf]
        %v879 = vld [vmem:[%s876 + $0x10] sm:$0xf]
        %v880 = vld [vmem:[%s876 + $0x18] sm:$0xf]
        %v881 = vld [vmem:[%s876 + $0x20] sm:$0xf]
        %v882 = vld [vmem:[%s876 + $0x28] sm:$0xf]
        %v883 = vld [vmem:[%s876 + $0x30] sm:$0xf]
        %v884 = vld [vmem:[%s876 + $0x38] sm:$0xf]
        %v885 = vunpack.c.l.bf16 %v877
        %v886 = vunpack.c.l.bf16 %v878
        %v887 = vunpack.c.l.bf16 %v879
        %v888 = vunpack.c.l.bf16 %v880
        %v889 = vunpack.c.l.bf16 %v881
        %v890 = vunpack.c.l.bf16 %v882
        %v891 = vunpack.c.l.bf16 %v883
        %v892 = vunpack.c.l.bf16 %v884
        %v893 = vpack.c.bf16 %v886, %v885
        %v894 = vpack.c.bf16 %v888, %v887
        %v895 = vpack.c.bf16 %v890, %v889
        %v896 = vpack.c.bf16 %v892, %v891
        %s897 = scalar_lea.vmem %s1, 56
        %v898 = vld [vmem:[%s897] sm:$0xf]
        %v899 = vld [vmem:[%s897 + $0x4] sm:$0xf]
        %v902 = vunpack.c.l.b16 %v898
        %v903 = vunpack.c.l.b16 %v899
        %v904 = vpack.c.b16 %v903, %v902
        %v907 = vsel %vm265, %v893, 0
        %v910 = vsel %vm265, %v894, 0
        %v913 = vsel %vm265, %v895, 0
        %v916 = vsel %vm265, %v896, 0
        %918 = vmatpush.bf16.msra.mxu0 0
        %919 = vmatpush.bf16.msra.mxu0 0
        %920 = vmatpush.bf16.msra.mxu0 0
        %921 = vmatpush.bf16.msra.mxu0 0
        %922 = vmatpush.bf16.msra.mxu0 0
        %923 = vmatpush.bf16.msra.mxu0 0
        %924 = vmatpush.bf16.msra.mxu0 0
        %925 = vmatpush.bf16.msra.mxu0 %v904
        %926 = vmatmul.bf16.gmra.mxu0 %v907
        %v927 = vpop.f32.mrf.mxu0
        %v928 = vadd.f32 0.0, %v927
        %v929 = vpop.f32.mrf.mxu0
        %v930 = vadd.f32 0.0, %v929
        %931 = vmatmul.bf16.gmra.mxu0 %v910
        %v932 = vpop.f32.mrf.mxu0
        %v933 = vadd.f32 0.0, %v932
        %v934 = vpop.f32.mrf.mxu0
        %v935 = vadd.f32 0.0, %v934
        %936 = vmatmul.bf16.gmra.mxu0 %v913
        %v937 = vpop.f32.mrf.mxu0
        %v938 = vadd.f32 0.0, %v937
        %v939 = vpop.f32.mrf.mxu0
        %v940 = vadd.f32 0.0, %v939
        %941 = vmatmul.bf16.gmra.mxu0 %v916
        %v942 = vpop.f32.mrf.mxu0
        %v943 = vadd.f32 0.0, %v942
        %v944 = vpop.f32.mrf.mxu0
        %v945 = vadd.f32 0.0, %v944
        %946 = vdwg.mxu0
        %v947 = vadd.f32 %v868, %v928
        %v948 = vadd.f32 %v869, %v930
        %v949 = vadd.f32 %v870, %v933
        %v950 = vadd.f32 %v871, %v935
        %v951 = vadd.f32 %v872, %v938
        %v952 = vadd.f32 %v873, %v940
        %v953 = vadd.f32 %v874, %v943
        %v954 = vadd.f32 %v875, %v945
        %v955 = vld [vmem:[%s797] sm:$0xf]
        %v956 = vld [vmem:[%s797 + $0x4] sm:$0x1]
        %v957 = vld [vmem:[%s797 + $0x8] sm:$0xf]
        %v958 = vld [vmem:[%s797 + $0xc] sm:$0x1]
        %v959 = vld [vmem:[%s797 + $0x10] sm:$0xf]
        %v960 = vld [vmem:[%s797 + $0x14] sm:$0x1]
        %v961 = vld [vmem:[%s797 + $0x18] sm:$0xf]
        %v962 = vld [vmem:[%s797 + $0x1c] sm:$0x1]
        %v963 = vld [vmem:[%s797 + $0x20] sm:$0xf]
        %v964 = vld [vmem:[%s797 + $0x24] sm:$0x1]
        %v965 = vld [vmem:[%s797 + $0x28] sm:$0xf]
        %v966 = vld [vmem:[%s797 + $0x2c] sm:$0x1]
        %v967 = vld [vmem:[%s797 + $0x30] sm:$0xf]
        %v968 = vld [vmem:[%s797 + $0x34] sm:$0x1]
        %v969 = vld [vmem:[%s797 + $0x38] sm:$0xf]
        %v970 = vld [vmem:[%s797 + $0x3c] sm:$0x1]
        %v971 = vunpack.c.l.bf16 %v955
        %v972 = vunpack.c.l.bf16 %v956
        %v973 = vunpack.c.l.bf16 %v957
        %v974 = vunpack.c.l.bf16 %v958
        %v975 = vunpack.c.l.bf16 %v959
        %v976 = vunpack.c.l.bf16 %v960
        %v977 = vunpack.c.l.bf16 %v961
        %v978 = vunpack.c.l.bf16 %v962
        %v979 = vunpack.c.l.bf16 %v963
        %v980 = vunpack.c.l.bf16 %v964
        %v981 = vunpack.c.l.bf16 %v965
        %v982 = vunpack.c.l.bf16 %v966
        %v983 = vunpack.c.l.bf16 %v967
        %v984 = vunpack.c.l.bf16 %v968
        %v985 = vunpack.c.l.bf16 %v969
        %v986 = vunpack.c.l.bf16 %v970
        %v1003 = vrot.slane %v971, 1
        %v1004 = vrot.slane %v972, 1
        %v1005 = vsel %vm402, %v1003, %v1004
        %v1006 = vrot.slane %v973, 1
        %v1007 = vrot.slane %v974, 1
        %v1008 = vsel %vm402, %v1006, %v1007
        %v1009 = vrot.slane %v975, 1
        %v1010 = vrot.slane %v976, 1
        %v1011 = vsel %vm402, %v1009, %v1010
        %v1012 = vrot.slane %v977, 1
        %v1013 = vrot.slane %v978, 1
        %v1014 = vsel %vm402, %v1012, %v1013
        %v1015 = vrot.slane %v979, 1
        %v1016 = vrot.slane %v980, 1
        %v1017 = vsel %vm402, %v1015, %v1016
        %v1018 = vrot.slane %v981, 1
        %v1019 = vrot.slane %v982, 1
        %v1020 = vsel %vm402, %v1018, %v1019
        %v1021 = vrot.slane %v983, 1
        %v1022 = vrot.slane %v984, 1
        %v1023 = vsel %vm402, %v1021, %v1022
        %v1024 = vrot.slane %v985, 1
        %v1025 = vrot.slane %v986, 1
        %v1026 = vsel %vm402, %v1024, %v1025
        %v1035 = vpack.c.bf16 %v1008, %v1005
        %v1036 = vpack.c.bf16 %v1014, %v1011
        %v1037 = vpack.c.bf16 %v1020, %v1017
        %v1038 = vpack.c.bf16 %v1026, %v1023
        %s1039 = scalar_lea.vmem %s1, 64
        %v1040 = vld [vmem:[%s1039] sm:$0xf]
        %v1041 = vld [vmem:[%s1039 + $0x4] sm:$0xf]
        %v1044 = vunpack.c.l.b16 %v1040
        %v1045 = vunpack.c.l.b16 %v1041
        %v1046 = vpack.c.b16 %v1045, %v1044
        %v1049 = vsel %vm265, %v1035, 0
        %v1052 = vsel %vm265, %v1036, 0
        %v1055 = vsel %vm265, %v1037, 0
        %v1058 = vsel %vm265, %v1038, 0
        %1060 = vmatpush.bf16.msra.mxu0 0
        %1061 = vmatpush.bf16.msra.mxu0 0
        %1062 = vmatpush.bf16.msra.mxu0 0
        %1063 = vmatpush.bf16.msra.mxu0 0
        %1064 = vmatpush.bf16.msra.mxu0 0
        %1065 = vmatpush.bf16.msra.mxu0 0
        %1066 = vmatpush.bf16.msra.mxu0 0
        %1067 = vmatpush.bf16.msra.mxu0 %v1046
        %1068 = vmatmul.bf16.gmra.mxu0 %v1049
        %v1069 = vpop.f32.mrf.mxu0
        %v1070 = vadd.f32 0.0, %v1069
        %v1071 = vpop.f32.mrf.mxu0
        %v1072 = vadd.f32 0.0, %v1071
        %1073 = vmatmul.bf16.gmra.mxu0 %v1052
        %v1074 = vpop.f32.mrf.mxu0
        %v1075 = vadd.f32 0.0, %v1074
        %v1076 = vpop.f32.mrf.mxu0
        %v1077 = vadd.f32 0.0, %v1076
        %1078 = vmatmul.bf16.gmra.mxu0 %v1055
        %v1079 = vpop.f32.mrf.mxu0
        %v1080 = vadd.f32 0.0, %v1079
        %v1081 = vpop.f32.mrf.mxu0
        %v1082 = vadd.f32 0.0, %v1081
        %1083 = vmatmul.bf16.gmra.mxu0 %v1058
        %v1084 = vpop.f32.mrf.mxu0
        %v1085 = vadd.f32 0.0, %v1084
        %v1086 = vpop.f32.mrf.mxu0
        %v1087 = vadd.f32 0.0, %v1086
        %1088 = vdwg.mxu0
        %v1089 = vadd.f32 %v947, %v1070
        %v1090 = vadd.f32 %v948, %v1072
        %v1091 = vadd.f32 %v949, %v1075
        %v1092 = vadd.f32 %v950, %v1077
        %v1093 = vadd.f32 %v951, %v1080
        %v1094 = vadd.f32 %v952, %v1082
        %v1095 = vadd.f32 %v953, %v1085
        %v1096 = vadd.f32 %v954, %v1087
        %v1097 = vadd.f32 %v1089, %v1090
        %v1098 = vadd.f32 %v1097, %v1091
        %v1099 = vadd.f32 %v1098, %v1092
        %v1100 = vadd.f32 %v1099, %v1093
        %v1101 = vadd.f32 %v1100, %v1094
        %v1102 = vadd.f32 %v1101, %v1095
        %v1103 = vadd.f32 %v1102, %v1096
        %v1104 = vrot.slane %v1103, 4
        %v1105 = vadd.f32 %v1103, %v1104
        %v1106 = vrot.slane %v1105, 2
        %v1107 = vadd.f32 %v1105, %v1106
        %v1108 = vrot.slane %v1107, 1
        %v1109 = vadd.f32 %v1107, %v1108
        %v1110 = vmul.f32 %v1109, 0.015625
        %v1111 = vsub.f32 %v1089, %v1110
        %v1112 = vsub.f32 %v1090, %v1110
        %v1113 = vsub.f32 %v1091, %v1110
        %v1114 = vsub.f32 %v1092, %v1110
        %v1115 = vsub.f32 %v1093, %v1110
        %v1116 = vsub.f32 %v1094, %v1110
        %v1117 = vsub.f32 %v1095, %v1110
        %v1118 = vsub.f32 %v1096, %v1110
        %1119 = vst [vmem:[%s200] sm:$0x1] %v1109
        %v1120 = vmul.f32 %v1111, %v1111
        %v1121 = vmul.f32 %v1112, %v1112
        %v1122 = vmul.f32 %v1113, %v1113
        %v1123 = vmul.f32 %v1114, %v1114
        %v1124 = vmul.f32 %v1115, %v1115
        %v1125 = vmul.f32 %v1116, %v1116
        %v1126 = vmul.f32 %v1117, %v1117
        %v1127 = vmul.f32 %v1118, %v1118
        %v1128 = vadd.f32 %v1120, %v1121
        %v1129 = vadd.f32 %v1128, %v1122
        %v1130 = vadd.f32 %v1129, %v1123
        %v1131 = vadd.f32 %v1130, %v1124
        %v1132 = vadd.f32 %v1131, %v1125
        %v1133 = vadd.f32 %v1132, %v1126
        %v1134 = vadd.f32 %v1133, %v1127
        %v1135 = vrot.slane %v1134, 4
        %v1136 = vadd.f32 %v1134, %v1135
        %v1137 = vrot.slane %v1136, 2
        %v1138 = vadd.f32 %v1136, %v1137
        %v1139 = vrot.slane %v1138, 1
        %v1140 = vadd.f32 %v1138, %v1139
        %1141 = vst [vmem:[%s206] sm:$0x1] %v1140
        %v1142 = vpack.c.bf16 %v1089, %v1089
        %v1143 = vpack.c.bf16 %v1090, %v1090
        %v1144 = vpack.c.bf16 %v1091, %v1091
        %v1145 = vpack.c.bf16 %v1092, %v1092
        %v1146 = vpack.c.bf16 %v1093, %v1093
        %v1147 = vpack.c.bf16 %v1094, %v1094
        %v1148 = vpack.c.bf16 %v1095, %v1095
        %v1149 = vpack.c.bf16 %v1096, %v1096
        %1150 = vst [vmem:[%s194] sm:$0xf] %v1142
        %1151 = vst [vmem:[%s194 + $0x4] sm:$0xf] %v1143
        %1152 = vst [vmem:[%s194 + $0x8] sm:$0xf] %v1144
        %1153 = vst [vmem:[%s194 + $0xc] sm:$0xf] %v1145
        %1154 = vst [vmem:[%s194 + $0x10] sm:$0xf] %v1146
        %1155 = vst [vmem:[%s194 + $0x14] sm:$0xf] %v1147
        %1156 = vst [vmem:[%s194 + $0x18] sm:$0xf] %v1148
        %1157 = vst [vmem:[%s194 + $0x1c] sm:$0xf] %v1149
        %s1158 = sand.u32 %s77, 1
        %s1159 = scalar_lea.sflag [#allocation3], %s1158
        %s1160 = sand.u32 %s77, 1
        %s1161 = smul.addr %s1160, 32
        %s1162 = scalar_lea.vmem [#allocation2], %s1161
        %s1163 = sand.u32 %s22, 1
        %s1164 = scalar_lea.sflag [#allocation5], %s1163
        %s1165 = sand.u32 %s103, 1
        %s1166 = scalar_lea.vmem [#allocation4], %s1165
        %s1167 = sand.u32 %s22, 1
        %s1168 = scalar_lea.sflag [#allocation5], %s1167
        %s1169 = sand.u32 %s129, 1
        %s1170 = scalar_lea.vmem [#allocation6], %s1169
        // Predicated region
        $region29: #{tpu_custom_call.1} parent=27 // pred_check
          %p1171 = pneg %p87
        $region30: #{tpu_custom_call.1} parent=27 // pred_check_branch
          %1173 = sbr.rel (%p1171) target = $region32
        $region31: #{tpu_custom_call.1} parent=27 // pred_region
          %1175 = vsyncadd %s1159, 0
          %s1176 = smul.addr %s22, 8
          %s1177 = smul.addr %s1176, 4
          %s1178 = scalar_lea.hbm %s2, %s1177
          %s1179 = sshll.u32 %s1162, 4
          %s1180 = int_to_ptr.vmem [resolvable:$true] %s1179
          %s1181 = sshll.u32 %s1178, 4
          %s1182 = int_to_ptr.hbm [resolvable:$true] %s1181
          %1187 = dma.vmem_to_hbm [thread:$0]  %s1180, 512, %s1182, %s1159, 64, 64, 4
        $region32: #{tpu_custom_call.1} parent=27 // pred_fallthru
          _
        // Predicated region
        $region33: #{tpu_custom_call.1} parent=27 // pred_check
          %p1188 = pneg %p113
        $region34: #{tpu_custom_call.1} parent=27 // pred_check_branch
          %1190 = sbr.rel (%p1188) target = $region36
        $region35: #{tpu_custom_call.1} parent=27 // pred_region
          %1192 = vsyncadd %s1164, 0
          %s1193 = scalar_lea.hbm %s3, %s22
          %s1195 = sshll.u32 %s1166, 4
          %s1196 = int_to_ptr.vmem [resolvable:$true] %s1195
          %s1197 = sshll.u32 %s1193, 4
          %s1198 = int_to_ptr.hbm [resolvable:$true] %s1197
          %1200 = dma.vmem_to_hbm [thread:$0]  %s1196, 16, %s1198, %s1164
        $region36: #{tpu_custom_call.1} parent=27 // pred_fallthru
          _
        // Predicated region
        $region37: #{tpu_custom_call.1} parent=27 // pred_check
          %p1201 = pneg %p139
        $region38: #{tpu_custom_call.1} parent=27 // pred_check_branch
          %1203 = sbr.rel (%p1201) target = $region40
        $region39: #{tpu_custom_call.1} parent=27 // pred_region
          %1205 = vsyncadd %s1168, 0
          %s1206 = scalar_lea.hbm %s4, %s22
          %s1208 = sshll.u32 %s1170, 4
          %s1209 = int_to_ptr.vmem [resolvable:$true] %s1208
          %s1210 = sshll.u32 %s1206, 4
          %s1211 = int_to_ptr.hbm [resolvable:$true] %s1210
          %1213 = dma.vmem_to_hbm [thread:$0]  %s1209, 16, %s1211, %s1168
        $region40: #{tpu_custom_call.1} parent=27 // pred_fallthru
          _
      $region28: #{tpu_custom_call.1} parent=5 // pred_fallthru
        _
      %p1214 = scmp.le.s32.totalorder 2, %s17
      // Predicated region
      $region41: #{tpu_custom_call.1} parent=5 // pred_check
        %p1215 = pneg %p1214
      $region42: #{tpu_custom_call.1} parent=5 // pred_check_branch
        %1217 = sbr.rel (%p1215) target = $region44
      $region43: #{tpu_custom_call.1} parent=5 // pred_region
        %s1218 = ssub.s32 %s17, 2
        // Predicated region
        $region45: #{tpu_custom_call.1} parent=43 // pred_check
          %p1219 = pneg %p93
        $region46: #{tpu_custom_call.1} parent=43 // pred_check_branch
          %1221 = sbr.rel (%p1219) target = $region48
        $region47: #{tpu_custom_call.1} parent=43 // pred_region
          %s1222 = sand.u32 %s78, 1
          %s1223 = scalar_lea.sflag [#allocation3], %s1222
          %s1224 = sand.u32 %s78, 1
          %s1225 = smul.addr %s1224, 32
          %s1226 = scalar_lea.vmem [#allocation2], %s1225
          %1228 = dma.done %s1223, 512
        $region48: #{tpu_custom_call.1} parent=43 // pred_fallthru
          _
        // Predicated region
        $region49: #{tpu_custom_call.1} parent=43 // pred_check
          %p1229 = pneg %p119
        $region50: #{tpu_custom_call.1} parent=43 // pred_check_branch
          %1231 = sbr.rel (%p1229) target = $region52
        $region51: #{tpu_custom_call.1} parent=43 // pred_region
          %s1232 = sand.u32 %s23, 1
          %s1233 = scalar_lea.sflag [#allocation5], %s1232
          %s1234 = sand.u32 %s104, 1
          %s1235 = scalar_lea.vmem [#allocation4], %s1234
          %1237 = dma.done %s1233, 16
        $region52: #{tpu_custom_call.1} parent=43 // pred_fallthru
          _
        // Predicated region
        $region53: #{tpu_custom_call.1} parent=43 // pred_check
          %p1238 = pneg %p145
        $region54: #{tpu_custom_call.1} parent=43 // pred_check_branch
          %1240 = sbr.rel (%p1238) target = $region56
        $region55: #{tpu_custom_call.1} parent=43 // pred_region
          %s1241 = sand.u32 %s23, 1
          %s1242 = scalar_lea.sflag [#allocation5], %s1241
          %s1243 = sand.u32 %s130, 1
          %s1244 = scalar_lea.vmem [#allocation6], %s1243
          %1246 = dma.done %s1242, 16
        $region56: #{tpu_custom_call.1} parent=43 // pred_fallthru
          _
      $region44: #{tpu_custom_call.1} parent=5 // pred_fallthru
        _
    $region6: #{tpu_custom_call.1} parent=1 // loop_footer
      %s21 = sadd.s32 1, %s17
    $region7: #{tpu_custom_call.1} parent=1 // loop_footer_branch
      %16 = sbr.rel target = $region3
    $region8: #{tpu_custom_call.1} parent=1 // loop_exit
      _
    %1247 = vsyncpa [#allocation3], 1
    %s1248 = scalar_lea.sflag [#allocation3], 1
    %1249 = vsyncpa %s1248, 1
    %1250 = vsyncpa [#allocation5], 1
    %s1251 = scalar_lea.sflag [#allocation5], 1
    %1252 = vsyncpa %s1251, 1

</llo_original>
